<compile_context>
chip_gen: v7x
topology: tpu7x:2x2x1
jax: 0.10.0
libtpu: 0.0.40
codegen_flags: <defaults>
</compile_context>

<pallas_src>
import math

import jax
import jax.numpy as jnp
import numpy as np
from jax.experimental import pallas as pl
from jax.experimental.pallas import tpu as pltpu  # noqa: F401  (TPU backend)

# Model hyper-parameters (mirrors MultiHeadAttention.__init__)
D_MODEL = 32
H = 4
D_K = D_MODEL // H
assert D_MODEL % H == 0

# Problem sizes (small, synthetic)
B = 2
L = 16                                  # sequence length


def mha_kernel(q_ref, k_ref, wq_ref, bq_ref, wk_ref, bk_ref, mask_ref, out_ref):
    """q_ref/k_ref: (B*L, D); weights pre-transposed (D, D); mask (B, 1, L) float.

    out_ref: (B*H, L, L) attention probabilities (reshaped to (B, H, L, L)
    outside the kernel).
    """
    scale = 1.0 / math.sqrt(D_K)

    # One MXU matmul per projection for the whole batch (M = B*L rows).
    # Fold the 1/sqrt(d_k) score scaling into q once.
    qp = (jnp.dot(q_ref[...], wq_ref[...], preferred_element_type=jnp.float32)
          + bq_ref[...]) * scale                                  # (B*L, D)
    kp = (jnp.dot(k_ref[...], wk_ref[...], preferred_element_type=jnp.float32)
          + bk_ref[...])                                          # (B*L, D)

    mask = mask_ref[...]                                          # (B, 1, L)

    for b in range(B):                                            # static unroll (B*H = 8)
        key_mask = mask[b] > 0.5                                  # (1, L); broadcasts over query rows
        r0 = b * L
        for h in range(H):
            c0 = h * D_K
            qh = qp[r0:r0 + L, c0:c0 + D_K]                       # (L, d_k) static slice
            kh = kp[r0:r0 + L, c0:c0 + D_K]                       # (L, d_k)
            # scores = q_h @ k_h^T : contract d_k directly, no explicit transpose.
            s = jax.lax.dot_general(qh, kh, (((1,), (1,)), ((), ())),
                                    preferred_element_type=jnp.float32)  # (L, L)
            s = jnp.where(key_mask, -10000.0, s)                  # masked_fill
            # softmax over keys (numerically stable, matches F.softmax)
            m = jnp.max(s, axis=-1, keepdims=True)
            e = jnp.exp(s - m)
            denom = jnp.sum(e, axis=-1, keepdims=True)
            p = e * pl.reciprocal(denom, approx=False)            # exact: keeps 1e-5 tolerance
            # TODO(synk): nn.Dropout(0.1) on p_attn is identity in eval mode; omitted.
            out_ref[b * H + h] = p.astype(out_ref.dtype)


def multi_head_attention(query, key, mask_bool, params):
    """Pallas wrapper reproducing MultiHeadAttention.forward -> p_attn (B, H, L, L)."""
    wq_t, bq, wk_t, bk = params
    # Wrapper-side reshapes are free XLA layout ops; kernel sees (B*L, D) rows.
    q2d = query.reshape(B * L, D_MODEL)
    k2d = key.reshape(B * L, D_MODEL)
    mask_f = mask_bool.astype(jnp.float32)                        # (B, 1, L), 1.0 = masked

    # Single kernel invocation, no grid: every array (a few KiB total) is
    # mapped whole into VMEM by the default BlockSpec.
    attn = pl.pallas_call(
        mha_kernel,
        out_shape=jax.ShapeDtypeStruct((B * H, L, L), jnp.float32),
    )(q2d, k2d, wq_t, bq, wk_t, bk, mask_f)
    return attn.reshape(B, H, L, L)


def reference_forward(query, key, mask_bool, params):
    """Pure-JAX reference of the PyTorch forward (eval mode, dropout = identity)."""
    wq_t, bq, wk_t, bk = params
    qp = query @ wq_t + bq                                        # (B, L, D)
    kp = key @ wk_t + bk
    qh = qp.reshape(B, L, H, D_K).transpose(0, 2, 1, 3)           # (B, H, L, d_k)
    kh = kp.reshape(B, L, H, D_K).transpose(0, 2, 1, 3)
    scores = jnp.einsum('bhqd,bhkd->bhqk', qh, kh) / math.sqrt(D_K)
    scores = jnp.where(mask_bool[:, None, :, :], -10000.0, scores)
    return jax.nn.softmax(scores, axis=-1)


if __name__ == "__main__":
    rng = jax.random.PRNGKey(0)
    kq, kk, kwq, kbq, kwk, kbk = jax.random.split(rng, 6)

    # Inputs
    query = jax.random.normal(kq, (B, L, D_MODEL), dtype=jnp.float32)
    key_in = jax.random.normal(kk, (B, L, D_MODEL), dtype=jnp.float32)

    # Key-padding mask: batch 0 has all L valid keys, batch 1 has 12.
    # Shape (B, 1, L), True = masked (matches masked_fill semantics after
    # mask.unsqueeze(1) -> (B, 1, 1, L) broadcast in the PyTorch code).
    lengths = jnp.array([L, 12])
    key_pos = jnp.arange(L)[None, :]
    mask_bool = (key_pos >= lengths[:, None])[:, None, :]

    # Synthetic parameters for the two Linear(d_model, d_model) layers,
    # stored pre-transposed as (in_dim, out_dim); biases as (1, out_dim).
    wq_t = 0.1 * jax.random.normal(kwq, (D_MODEL, D_MODEL), dtype=jnp.float32)
    bq = 0.1 * jax.random.normal(kbq, (1, D_MODEL), dtype=jnp.float32)
    wk_t = 0.1 * jax.random.normal(kwk, (D_MODEL, D_MODEL), dtype=jnp.float32)
    bk = 0.1 * jax.random.normal(kbk, (1, D_MODEL), dtype=jnp.float32)
    params = (wq_t, bq, wk_t, bk)

    attn = multi_head_attention(query, key_in, mask_bool, params)
    attn = jax.block_until_ready(attn)

    ref = reference_forward(query, key_in, mask_bool, params)
    np.testing.assert_allclose(np.asarray(attn), np.asarray(ref),
                               rtol=1e-5, atol=1e-5)

    print("KERNEL_OK")
</pallas_src>

<mosaic_0001>
module attributes {stable_mosaic.version = 11 : i64} {
  func.func @mha_kernel(%arg0: memref<32x32xf32, #tpu.memory_space<vmem>>, %arg1: memref<32x32xf32, #tpu.memory_space<vmem>>, %arg2: memref<32x32xf32, #tpu.memory_space<vmem>>, %arg3: memref<1x32xf32, #tpu.memory_space<vmem>>, %arg4: memref<32x32xf32, #tpu.memory_space<vmem>>, %arg5: memref<1x32xf32, #tpu.memory_space<vmem>>, %arg6: memref<2x1x16xf32, #tpu.memory_space<vmem>>, %arg7: memref<8x16x16xf32, #tpu.memory_space<vmem>>) attributes {dimension_semantics = [], scalar_prefetch = 0 : i64, scratch_operands = 0 : i64, tpu.core_type = #tpu.core_type<tc>} {
    %c0 = arith.constant 0 : index
    %c0_0 = arith.constant 0 : index
    %0 = vector.load %arg0[%c0, %c0_0] : memref<32x32xf32, #tpu.memory_space<vmem>>, vector<32x32xf32>
    %c0_1 = arith.constant 0 : index
    %c0_2 = arith.constant 0 : index
    %1 = vector.load %arg2[%c0_1, %c0_2] : memref<32x32xf32, #tpu.memory_space<vmem>>, vector<32x32xf32>
    %cst = arith.constant dense<0.000000e+00> : vector<32x32xf32>
    %2 = tpu.matmul %0, %1, %cst {dimension_numbers = #tpu.dot_dimension_numbers<[1], [0], [0], [1], [0, 0, 1, 1], [], []>} : vector<32x32xf32>, vector<32x32xf32>, vector<32x32xf32> -> vector<32x32xf32>
    %c0_3 = arith.constant 0 : index
    %c0_4 = arith.constant 0 : index
    %3 = vector.load %arg3[%c0_3, %c0_4] : memref<1x32xf32, #tpu.memory_space<vmem>>, vector<1x32xf32>
    %4 = vector.broadcast %3 : vector<1x32xf32> to vector<32x32xf32>
    %5 = arith.addf %2, %4 : vector<32x32xf32>
    %cst_5 = arith.constant 0.353553385 : f32
    %6 = vector.broadcast %cst_5 : f32 to vector<32x32xf32>
    %7 = arith.mulf %5, %6 : vector<32x32xf32>
    %c0_6 = arith.constant 0 : index
    %c0_7 = arith.constant 0 : index
    %8 = vector.load %arg1[%c0_6, %c0_7] : memref<32x32xf32, #tpu.memory_space<vmem>>, vector<32x32xf32>
    %c0_8 = arith.constant 0 : index
    %c0_9 = arith.constant 0 : index
    %9 = vector.load %arg4[%c0_8, %c0_9] : memref<32x32xf32, #tpu.memory_space<vmem>>, vector<32x32xf32>
    %cst_10 = arith.constant dense<0.000000e+00> : vector<32x32xf32>
    %10 = tpu.matmul %8, %9, %cst_10 {dimension_numbers = #tpu.dot_dimension_numbers<[1], [0], [0], [1], [0, 0, 1, 1], [], []>} : vector<32x32xf32>, vector<32x32xf32>, vector<32x32xf32> -> vector<32x32xf32>
    %c0_11 = arith.constant 0 : index
    %c0_12 = arith.constant 0 : index
    %11 = vector.load %arg5[%c0_11, %c0_12] : memref<1x32xf32, #tpu.memory_space<vmem>>, vector<1x32xf32>
    %12 = vector.broadcast %11 : vector<1x32xf32> to vector<32x32xf32>
    %13 = arith.addf %10, %12 : vector<32x32xf32>
    %c0_13 = arith.constant 0 : index
    %c0_14 = arith.constant 0 : index
    %c0_15 = arith.constant 0 : index
    %14 = vector.load %arg6[%c0_13, %c0_14, %c0_15] : memref<2x1x16xf32, #tpu.memory_space<vmem>>, vector<2x1x16xf32>
    %15 = vector.extract_strided_slice %14 {offsets = [0, 0, 0], sizes = [1, 1, 16], strides = [1, 1, 1]} : vector<2x1x16xf32> to vector<1x1x16xf32>
    %16 = vector.shape_cast %15 : vector<1x1x16xf32> to vector<1x16xf32>
    %cst_16 = arith.constant 5.000000e-01 : f32
    %17 = vector.broadcast %cst_16 : f32 to vector<1x16xf32>
    %18 = arith.cmpf ogt, %16, %17 : vector<1x16xf32>
    %19 = vector.extract_strided_slice %7 {offsets = [0, 0], sizes = [16, 8], strides = [1, 1]} : vector<32x32xf32> to vector<16x8xf32>
    %20 = vector.extract_strided_slice %13 {offsets = [0, 0], sizes = [16, 8], strides = [1, 1]} : vector<32x32xf32> to vector<16x8xf32>
    %cst_17 = arith.constant dense<0.000000e+00> : vector<16x16xf32>
    %21 = tpu.matmul %19, %20, %cst_17 {dimension_numbers = #tpu.dot_dimension_numbers<[1], [1], [0], [0], [0, 0, 1, 0], [], []>} : vector<16x8xf32>, vector<16x8xf32>, vector<16x16xf32> -> vector<16x16xf32>
    %cst_18 = arith.constant -1.000000e+04 : f32
    %22 = vector.shape_cast %18 : vector<1x16xi1> to vector<1x16xi1>
    %23 = vector.broadcast %22 : vector<1x16xi1> to vector<16x16xi1>
    %24 = vector.broadcast %cst_18 : f32 to vector<16x16xf32>
    %25 = arith.select %23, %24, %21 : vector<16x16xi1>, vector<16x16xf32>
    %cst_19 = arith.constant dense<0xFF800000> : vector<16xf32>
    %26 = vector.multi_reduction <maximumf>, %25, %cst_19 [1] : vector<16x16xf32> to vector<16xf32>
    %27 = vector.shape_cast %26 : vector<16xf32> to vector<16x1xf32>
    %28 = vector.broadcast %27 : vector<16x1xf32> to vector<16x16xf32>
    %29 = arith.subf %25, %28 : vector<16x16xf32>
    %30 = math.exp %29 : vector<16x16xf32>
    %cst_20 = arith.constant dense<0.000000e+00> : vector<16xf32>
    %31 = vector.multi_reduction <add>, %30, %cst_20 [1] : vector<16x16xf32> to vector<16xf32>
    %32 = vector.shape_cast %31 : vector<16xf32> to vector<16x1xf32>
    %33 = tpu.reciprocal %32 : vector<16x1xf32> -> vector<16x1xf32>
    %34 = vector.broadcast %33 : vector<16x1xf32> to vector<16x16xf32>
    %35 = arith.mulf %30, %34 : vector<16x16xf32>
    %c0_21 = arith.constant 0 : index
    %c0_22 = arith.constant 0 : index
    %c0_23 = arith.constant 0 : index
    %36 = vector.load %arg7[%c0_21, %c0_22, %c0_23] : memref<8x16x16xf32, #tpu.memory_space<vmem>>, vector<1x16x16xf32>
    %37 = vector.shape_cast %36 : vector<1x16x16xf32> to vector<16x16xf32>
    %38 = vector.shape_cast %35 : vector<16x16xf32> to vector<1x16x16xf32>
    tpu.vector_store %arg7[%c0_21, %c0_22, %c0_23], %38 {strides = array<i32>} : memref<8x16x16xf32, #tpu.memory_space<vmem>>, vector<1x16x16xf32>,
    %39 = vector.extract_strided_slice %7 {offsets = [0, 8], sizes = [16, 8], strides = [1, 1]} : vector<32x32xf32> to vector<16x8xf32>
    %40 = vector.extract_strided_slice %13 {offsets = [0, 8], sizes = [16, 8], strides = [1, 1]} : vector<32x32xf32> to vector<16x8xf32>
    %cst_24 = arith.constant dense<0.000000e+00> : vector<16x16xf32>
    %41 = tpu.matmul %39, %40, %cst_24 {dimension_numbers = #tpu.dot_dimension_numbers<[1], [1], [0], [0], [0, 0, 1, 0], [], []>} : vector<16x8xf32>, vector<16x8xf32>, vector<16x16xf32> -> vector<16x16xf32>
    %cst_25 = arith.constant -1.000000e+04 : f32
    %42 = vector.shape_cast %18 : vector<1x16xi1> to vector<1x16xi1>
    %43 = vector.broadcast %42 : vector<1x16xi1> to vector<16x16xi1>
    %44 = vector.broadcast %cst_25 : f32 to vector<16x16xf32>
    %45 = arith.select %43, %44, %41 : vector<16x16xi1>, vector<16x16xf32>
    %cst_26 = arith.constant dense<0xFF800000> : vector<16xf32>
    %46 = vector.multi_reduction <maximumf>, %45, %cst_26 [1] : vector<16x16xf32> to vector<16xf32>
    %47 = vector.shape_cast %46 : vector<16xf32> to vector<16x1xf32>
    %48 = vector.broadcast %47 : vector<16x1xf32> to vector<16x16xf32>
    %49 = arith.subf %45, %48 : vector<16x16xf32>
    %50 = math.exp %49 : vector<16x16xf32>
    %cst_27 = arith.constant dense<0.000000e+00> : vector<16xf32>
    %51 = vector.multi_reduction <add>, %50, %cst_27 [1] : vector<16x16xf32> to vector<16xf32>
    %52 = vector.shape_cast %51 : vector<16xf32> to vector<16x1xf32>
    %53 = tpu.reciprocal %52 : vector<16x1xf32> -> vector<16x1xf32>
    %54 = vector.broadcast %53 : vector<16x1xf32> to vector<16x16xf32>
    %55 = arith.mulf %50, %54 : vector<16x16xf32>
    %c1 = arith.constant 1 : index
    %c0_28 = arith.constant 0 : index
    %c0_29 = arith.constant 0 : index
    %56 = vector.load %arg7[%c1, %c0_28, %c0_29] : memref<8x16x16xf32, #tpu.memory_space<vmem>>, vector<1x16x16xf32>
    %57 = vector.shape_cast %56 : vector<1x16x16xf32> to vector<16x16xf32>
    %58 = vector.shape_cast %55 : vector<16x16xf32> to vector<1x16x16xf32>
    tpu.vector_store %arg7[%c1, %c0_28, %c0_29], %58 {strides = array<i32>} : memref<8x16x16xf32, #tpu.memory_space<vmem>>, vector<1x16x16xf32>,
    %59 = vector.extract_strided_slice %7 {offsets = [0, 16], sizes = [16, 8], strides = [1, 1]} : vector<32x32xf32> to vector<16x8xf32>
    %60 = vector.extract_strided_slice %13 {offsets = [0, 16], sizes = [16, 8], strides = [1, 1]} : vector<32x32xf32> to vector<16x8xf32>
    %cst_30 = arith.constant dense<0.000000e+00> : vector<16x16xf32>
    %61 = tpu.matmul %59, %60, %cst_30 {dimension_numbers = #tpu.dot_dimension_numbers<[1], [1], [0], [0], [0, 0, 1, 0], [], []>} : vector<16x8xf32>, vector<16x8xf32>, vector<16x16xf32> -> vector<16x16xf32>
    %cst_31 = arith.constant -1.000000e+04 : f32
    %62 = vector.shape_cast %18 : vector<1x16xi1> to vector<1x16xi1>
    %63 = vector.broadcast %62 : vector<1x16xi1> to vector<16x16xi1>
    %64 = vector.broadcast %cst_31 : f32 to vector<16x16xf32>
    %65 = arith.select %63, %64, %61 : vector<16x16xi1>, vector<16x16xf32>
    %cst_32 = arith.constant dense<0xFF800000> : vector<16xf32>
    %66 = vector.multi_reduction <maximumf>, %65, %cst_32 [1] : vector<16x16xf32> to vector<16xf32>
    %67 = vector.shape_cast %66 : vector<16xf32> to vector<16x1xf32>
    %68 = vector.broadcast %67 : vector<16x1xf32> to vector<16x16xf32>
    %69 = arith.subf %65, %68 : vector<16x16xf32>
    %70 = math.exp %69 : vector<16x16xf32>
    %cst_33 = arith.constant dense<0.000000e+00> : vector<16xf32>
    %71 = vector.multi_reduction <add>, %70, %cst_33 [1] : vector<16x16xf32> to vector<16xf32>
    %72 = vector.shape_cast %71 : vector<16xf32> to vector<16x1xf32>
    %73 = tpu.reciprocal %72 : vector<16x1xf32> -> vector<16x1xf32>
    %74 = vector.broadcast %73 : vector<16x1xf32> to vector<16x16xf32>
    %75 = arith.mulf %70, %74 : vector<16x16xf32>
    %c2 = arith.constant 2 : index
    %c0_34 = arith.constant 0 : index
    %c0_35 = arith.constant 0 : index
    %76 = vector.load %arg7[%c2, %c0_34, %c0_35] : memref<8x16x16xf32, #tpu.memory_space<vmem>>, vector<1x16x16xf32>
    %77 = vector.shape_cast %76 : vector<1x16x16xf32> to vector<16x16xf32>
    %78 = vector.shape_cast %75 : vector<16x16xf32> to vector<1x16x16xf32>
    tpu.vector_store %arg7[%c2, %c0_34, %c0_35], %78 {strides = array<i32>} : memref<8x16x16xf32, #tpu.memory_space<vmem>>, vector<1x16x16xf32>,
    %79 = vector.extract_strided_slice %7 {offsets = [0, 24], sizes = [16, 8], strides = [1, 1]} : vector<32x32xf32> to vector<16x8xf32>
    %80 = vector.extract_strided_slice %13 {offsets = [0, 24], sizes = [16, 8], strides = [1, 1]} : vector<32x32xf32> to vector<16x8xf32>
    %cst_36 = arith.constant dense<0.000000e+00> : vector<16x16xf32>
    %81 = tpu.matmul %79, %80, %cst_36 {dimension_numbers = #tpu.dot_dimension_numbers<[1], [1], [0], [0], [0, 0, 1, 0], [], []>} : vector<16x8xf32>, vector<16x8xf32>, vector<16x16xf32> -> vector<16x16xf32>
    %cst_37 = arith.constant -1.000000e+04 : f32
    %82 = vector.shape_cast %18 : vector<1x16xi1> to vector<1x16xi1>
    %83 = vector.broadcast %82 : vector<1x16xi1> to vector<16x16xi1>
    %84 = vector.broadcast %cst_37 : f32 to vector<16x16xf32>
    %85 = arith.select %83, %84, %81 : vector<16x16xi1>, vector<16x16xf32>
    %cst_38 = arith.constant dense<0xFF800000> : vector<16xf32>
    %86 = vector.multi_reduction <maximumf>, %85, %cst_38 [1] : vector<16x16xf32> to vector<16xf32>
    %87 = vector.shape_cast %86 : vector<16xf32> to vector<16x1xf32>
    %88 = vector.broadcast %87 : vector<16x1xf32> to vector<16x16xf32>
    %89 = arith.subf %85, %88 : vector<16x16xf32>
    %90 = math.exp %89 : vector<16x16xf32>
    %cst_39 = arith.constant dense<0.000000e+00> : vector<16xf32>
    %91 = vector.multi_reduction <add>, %90, %cst_39 [1] : vector<16x16xf32> to vector<16xf32>
    %92 = vector.shape_cast %91 : vector<16xf32> to vector<16x1xf32>
    %93 = tpu.reciprocal %92 : vector<16x1xf32> -> vector<16x1xf32>
    %94 = vector.broadcast %93 : vector<16x1xf32> to vector<16x16xf32>
    %95 = arith.mulf %90, %94 : vector<16x16xf32>
    %c3 = arith.constant 3 : index
    %c0_40 = arith.constant 0 : index
    %c0_41 = arith.constant 0 : index
    %96 = vector.load %arg7[%c3, %c0_40, %c0_41] : memref<8x16x16xf32, #tpu.memory_space<vmem>>, vector<1x16x16xf32>
    %97 = vector.shape_cast %96 : vector<1x16x16xf32> to vector<16x16xf32>
    %98 = vector.shape_cast %95 : vector<16x16xf32> to vector<1x16x16xf32>
    tpu.vector_store %arg7[%c3, %c0_40, %c0_41], %98 {strides = array<i32>} : memref<8x16x16xf32, #tpu.memory_space<vmem>>, vector<1x16x16xf32>,
    %99 = vector.extract_strided_slice %14 {offsets = [1, 0, 0], sizes = [1, 1, 16], strides = [1, 1, 1]} : vector<2x1x16xf32> to vector<1x1x16xf32>
    %100 = vector.shape_cast %99 : vector<1x1x16xf32> to vector<1x16xf32>
    %cst_42 = arith.constant 5.000000e-01 : f32
    %101 = vector.broadcast %cst_42 : f32 to vector<1x16xf32>
    %102 = arith.cmpf ogt, %100, %101 : vector<1x16xf32>
    %103 = vector.extract_strided_slice %7 {offsets = [16, 0], sizes = [16, 8], strides = [1, 1]} : vector<32x32xf32> to vector<16x8xf32>
    %104 = vector.extract_strided_slice %13 {offsets = [16, 0], sizes = [16, 8], strides = [1, 1]} : vector<32x32xf32> to vector<16x8xf32>
    %cst_43 = arith.constant dense<0.000000e+00> : vector<16x16xf32>
    %105 = tpu.matmul %103, %104, %cst_43 {dimension_numbers = #tpu.dot_dimension_numbers<[1], [1], [0], [0], [0, 0, 1, 0], [], []>} : vector<16x8xf32>, vector<16x8xf32>, vector<16x16xf32> -> vector<16x16xf32>
    %cst_44 = arith.constant -1.000000e+04 : f32
    %106 = vector.shape_cast %102 : vector<1x16xi1> to vector<1x16xi1>
    %107 = vector.broadcast %106 : vector<1x16xi1> to vector<16x16xi1>
    %108 = vector.broadcast %cst_44 : f32 to vector<16x16xf32>
    %109 = arith.select %107, %108, %105 : vector<16x16xi1>, vector<16x16xf32>
    %cst_45 = arith.constant dense<0xFF800000> : vector<16xf32>
    %110 = vector.multi_reduction <maximumf>, %109, %cst_45 [1] : vector<16x16xf32> to vector<16xf32>
    %111 = vector.shape_cast %110 : vector<16xf32> to vector<16x1xf32>
    %112 = vector.broadcast %111 : vector<16x1xf32> to vector<16x16xf32>
    %113 = arith.subf %109, %112 : vector<16x16xf32>
    %114 = math.exp %113 : vector<16x16xf32>
    %cst_46 = arith.constant dense<0.000000e+00> : vector<16xf32>
    %115 = vector.multi_reduction <add>, %114, %cst_46 [1] : vector<16x16xf32> to vector<16xf32>
    %116 = vector.shape_cast %115 : vector<16xf32> to vector<16x1xf32>
    %117 = tpu.reciprocal %116 : vector<16x1xf32> -> vector<16x1xf32>
    %118 = vector.broadcast %117 : vector<16x1xf32> to vector<16x16xf32>
    %119 = arith.mulf %114, %118 : vector<16x16xf32>
    %c4 = arith.constant 4 : index
    %c0_47 = arith.constant 0 : index
    %c0_48 = arith.constant 0 : index
    %120 = vector.load %arg7[%c4, %c0_47, %c0_48] : memref<8x16x16xf32, #tpu.memory_space<vmem>>, vector<1x16x16xf32>
    %121 = vector.shape_cast %120 : vector<1x16x16xf32> to vector<16x16xf32>
    %122 = vector.shape_cast %119 : vector<16x16xf32> to vector<1x16x16xf32>
    tpu.vector_store %arg7[%c4, %c0_47, %c0_48], %122 {strides = array<i32>} : memref<8x16x16xf32, #tpu.memory_space<vmem>>, vector<1x16x16xf32>,
    %123 = vector.extract_strided_slice %7 {offsets = [16, 8], sizes = [16, 8], strides = [1, 1]} : vector<32x32xf32> to vector<16x8xf32>
    %124 = vector.extract_strided_slice %13 {offsets = [16, 8], sizes = [16, 8], strides = [1, 1]} : vector<32x32xf32> to vector<16x8xf32>
    %cst_49 = arith.constant dense<0.000000e+00> : vector<16x16xf32>
    %125 = tpu.matmul %123, %124, %cst_49 {dimension_numbers = #tpu.dot_dimension_numbers<[1], [1], [0], [0], [0, 0, 1, 0], [], []>} : vector<16x8xf32>, vector<16x8xf32>, vector<16x16xf32> -> vector<16x16xf32>
    %cst_50 = arith.constant -1.000000e+04 : f32
    %126 = vector.shape_cast %102 : vector<1x16xi1> to vector<1x16xi1>
    %127 = vector.broadcast %126 : vector<1x16xi1> to vector<16x16xi1>
    %128 = vector.broadcast %cst_50 : f32 to vector<16x16xf32>
    %129 = arith.select %127, %128, %125 : vector<16x16xi1>, vector<16x16xf32>
    %cst_51 = arith.constant dense<0xFF800000> : vector<16xf32>
    %130 = vector.multi_reduction <maximumf>, %129, %cst_51 [1] : vector<16x16xf32> to vector<16xf32>
    %131 = vector.shape_cast %130 : vector<16xf32> to vector<16x1xf32>
    %132 = vector.broadcast %131 : vector<16x1xf32> to vector<16x16xf32>
    %133 = arith.subf %129, %132 : vector<16x16xf32>
    %134 = math.exp %133 : vector<16x16xf32>
    %cst_52 = arith.constant dense<0.000000e+00> : vector<16xf32>
    %135 = vector.multi_reduction <add>, %134, %cst_52 [1] : vector<16x16xf32> to vector<16xf32>
    %136 = vector.shape_cast %135 : vector<16xf32> to vector<16x1xf32>
    %137 = tpu.reciprocal %136 : vector<16x1xf32> -> vector<16x1xf32>
    %138 = vector.broadcast %137 : vector<16x1xf32> to vector<16x16xf32>
    %139 = arith.mulf %134, %138 : vector<16x16xf32>
    %c5 = arith.constant 5 : index
    %c0_53 = arith.constant 0 : index
    %c0_54 = arith.constant 0 : index
    %140 = vector.load %arg7[%c5, %c0_53, %c0_54] : memref<8x16x16xf32, #tpu.memory_space<vmem>>, vector<1x16x16xf32>
    %141 = vector.shape_cast %140 : vector<1x16x16xf32> to vector<16x16xf32>
    %142 = vector.shape_cast %139 : vector<16x16xf32> to vector<1x16x16xf32>
    tpu.vector_store %arg7[%c5, %c0_53, %c0_54], %142 {strides = array<i32>} : memref<8x16x16xf32, #tpu.memory_space<vmem>>, vector<1x16x16xf32>,
    %143 = vector.extract_strided_slice %7 {offsets = [16, 16], sizes = [16, 8], strides = [1, 1]} : vector<32x32xf32> to vector<16x8xf32>
    %144 = vector.extract_strided_slice %13 {offsets = [16, 16], sizes = [16, 8], strides = [1, 1]} : vector<32x32xf32> to vector<16x8xf32>
    %cst_55 = arith.constant dense<0.000000e+00> : vector<16x16xf32>
    %145 = tpu.matmul %143, %144, %cst_55 {dimension_numbers = #tpu.dot_dimension_numbers<[1], [1], [0], [0], [0, 0, 1, 0], [], []>} : vector<16x8xf32>, vector<16x8xf32>, vector<16x16xf32> -> vector<16x16xf32>
    %cst_56 = arith.constant -1.000000e+04 : f32
    %146 = vector.shape_cast %102 : vector<1x16xi1> to vector<1x16xi1>
    %147 = vector.broadcast %146 : vector<1x16xi1> to vector<16x16xi1>
    %148 = vector.broadcast %cst_56 : f32 to vector<16x16xf32>
    %149 = arith.select %147, %148, %145 : vector<16x16xi1>, vector<16x16xf32>
    %cst_57 = arith.constant dense<0xFF800000> : vector<16xf32>
    %150 = vector.multi_reduction <maximumf>, %149, %cst_57 [1] : vector<16x16xf32> to vector<16xf32>
    %151 = vector.shape_cast %150 : vector<16xf32> to vector<16x1xf32>
    %152 = vector.broadcast %151 : vector<16x1xf32> to vector<16x16xf32>
    %153 = arith.subf %149, %152 : vector<16x16xf32>
    %154 = math.exp %153 : vector<16x16xf32>
    %cst_58 = arith.constant dense<0.000000e+00> : vector<16xf32>
    %155 = vector.multi_reduction <add>, %154, %cst_58 [1] : vector<16x16xf32> to vector<16xf32>
    %156 = vector.shape_cast %155 : vector<16xf32> to vector<16x1xf32>
    %157 = tpu.reciprocal %156 : vector<16x1xf32> -> vector<16x1xf32>
    %158 = vector.broadcast %157 : vector<16x1xf32> to vector<16x16xf32>
    %159 = arith.mulf %154, %158 : vector<16x16xf32>
    %c6 = arith.constant 6 : index
    %c0_59 = arith.constant 0 : index
    %c0_60 = arith.constant 0 : index
    %160 = vector.load %arg7[%c6, %c0_59, %c0_60] : memref<8x16x16xf32, #tpu.memory_space<vmem>>, vector<1x16x16xf32>
    %161 = vector.shape_cast %160 : vector<1x16x16xf32> to vector<16x16xf32>
    %162 = vector.shape_cast %159 : vector<16x16xf32> to vector<1x16x16xf32>
    tpu.vector_store %arg7[%c6, %c0_59, %c0_60], %162 {strides = array<i32>} : memref<8x16x16xf32, #tpu.memory_space<vmem>>, vector<1x16x16xf32>,
    %163 = vector.extract_strided_slice %7 {offsets = [16, 24], sizes = [16, 8], strides = [1, 1]} : vector<32x32xf32> to vector<16x8xf32>
    %164 = vector.extract_strided_slice %13 {offsets = [16, 24], sizes = [16, 8], strides = [1, 1]} : vector<32x32xf32> to vector<16x8xf32>
    %cst_61 = arith.constant dense<0.000000e+00> : vector<16x16xf32>
    %165 = tpu.matmul %163, %164, %cst_61 {dimension_numbers = #tpu.dot_dimension_numbers<[1], [1], [0], [0], [0, 0, 1, 0], [], []>} : vector<16x8xf32>, vector<16x8xf32>, vector<16x16xf32> -> vector<16x16xf32>
    %cst_62 = arith.constant -1.000000e+04 : f32
    %166 = vector.shape_cast %102 : vector<1x16xi1> to vector<1x16xi1>
    %167 = vector.broadcast %166 : vector<1x16xi1> to vector<16x16xi1>
    %168 = vector.broadcast %cst_62 : f32 to vector<16x16xf32>
    %169 = arith.select %167, %168, %165 : vector<16x16xi1>, vector<16x16xf32>
    %cst_63 = arith.constant dense<0xFF800000> : vector<16xf32>
    %170 = vector.multi_reduction <maximumf>, %169, %cst_63 [1] : vector<16x16xf32> to vector<16xf32>
    %171 = vector.shape_cast %170 : vector<16xf32> to vector<16x1xf32>
    %172 = vector.broadcast %171 : vector<16x1xf32> to vector<16x16xf32>
    %173 = arith.subf %169, %172 : vector<16x16xf32>
    %174 = math.exp %173 : vector<16x16xf32>
    %cst_64 = arith.constant dense<0.000000e+00> : vector<16xf32>
    %175 = vector.multi_reduction <add>, %174, %cst_64 [1] : vector<16x16xf32> to vector<16xf32>
    %176 = vector.shape_cast %175 : vector<16xf32> to vector<16x1xf32>
    %177 = tpu.reciprocal %176 : vector<16x1xf32> -> vector<16x1xf32>
    %178 = vector.broadcast %177 : vector<16x1xf32> to vector<16x16xf32>
    %179 = arith.mulf %174, %178 : vector<16x16xf32>
    %c7 = arith.constant 7 : index
    %c0_65 = arith.constant 0 : index
    %c0_66 = arith.constant 0 : index
    %180 = vector.load %arg7[%c7, %c0_65, %c0_66] : memref<8x16x16xf32, #tpu.memory_space<vmem>>, vector<1x16x16xf32>
    %181 = vector.shape_cast %180 : vector<1x16x16xf32> to vector<16x16xf32>
    %182 = vector.shape_cast %179 : vector<16x16xf32> to vector<1x16x16xf32>
    tpu.vector_store %arg7[%c7, %c0_65, %c0_66], %182 {strides = array<i32>} : memref<8x16x16xf32, #tpu.memory_space<vmem>>, vector<1x16x16xf32>,
    return
  }
}

</mosaic_0001>

<llo_original>
// kernel: tpu_custom_call.1
$region0: #{tpu_custom_call.1}
  #allocation0 [shape = 'u32[]', space=smem, size = 0x4, offset = 0x4, fixed_abs, tag = 'smem constant byte address 0x4 - core index']
  #allocation1 [shape = 'u32[144,128]{1,0:T(1,128)}', space=vmem, size = 0x12000, scoped, tag = 'internal scratch']
  %s0 = inlined_call_operand.hbm [shape: f32[32,32], index: 0, kind: input, shape index: {}]
  %s1 = inlined_call_operand.hbm [shape: f32[32,32], index: 1, kind: input, shape index: {}]
  %s2 = inlined_call_operand.hbm [shape: f32[32,32], index: 2, kind: input, shape index: {}]
  %s3 = inlined_call_operand.vmem [shape: f32[1,32], index: 3, kind: input, shape index: {}]
  %s4 = inlined_call_operand.hbm [shape: f32[32,32], index: 4, kind: input, shape index: {}]
  %s5 = inlined_call_operand.vmem [shape: f32[1,32], index: 5, kind: input, shape index: {}]
  %s6 = inlined_call_operand.vmem [shape: f32[2,1,16], index: 6, kind: input, shape index: {}]
  %s7 = inlined_call_operand.hbm [shape: f32[8,16,16], index: 7, kind: output, shape index: {}]
  %s8 = sld [smem:[#allocation0]]
  $region54: #{tpu_custom_call.1} parent=0
    _
  %s10 = ssub.s32 1, %s8
  %s11 = scalar_select 0, %s10, %s8
  $region1: #{tpu_custom_call.1} parent=0
    #allocation2 [shape = 'u8[16384]{0}', space=vmem, size = 0x4000, scoped, tag = 'input window, operand 0, single buffered']
    #allocation3 [shape = 's32[1]{0}', space=sflag, size = 0x4, scoped, tag = 'scoped memory for tpu_custom_call.1']
    #allocation4 [shape = 's32[1]{0}', space=sflag, size = 0x4, scoped, tag = 'scoped memory for tpu_custom_call.1']
    #allocation5 [shape = 'u8[16384]{0}', space=vmem, size = 0x4000, scoped, tag = 'input window, operand 1, single buffered']
    #allocation6 [shape = 's32[1]{0}', space=sflag, size = 0x4, scoped, tag = 'scoped memory for tpu_custom_call.1']
    #allocation7 [shape = 'u8[16384]{0}', space=vmem, size = 0x4000, scoped, tag = 'input window, operand 2, single buffered']
    #allocation8 [shape = 'u8[16384]{0}', space=vmem, size = 0x4000, scoped, tag = 'input window, operand 4, single buffered']
    #allocation9 [shape = 's32[1]{0}', space=sflag, size = 0x4, scoped, tag = 'scoped memory for tpu_custom_call.1']
    #allocation10 [shape = 'u8[65536]{0}', space=vmem, size = 0x10000, scoped, tag = 'output window, operand 0, single buffered']
    %12 = vsyncpa [#allocation3], 0
    %13 = vsyncpa [#allocation6], 0
    %14 = vsyncpa [#allocation9], 0
    %15 = vsyncpa [#allocation4], 0
    // Predicated region
    $region2: #{tpu_custom_call.1} parent=1 // pred_check
      _
    $region3: #{tpu_custom_call.1} parent=1 // pred_check_branch
      %17 = sbr.rel (0) target = $region5
    $region4: #{tpu_custom_call.1} parent=1 // pred_region
      %s19 = ssub.s32 512, 512
      %20 = vsyncadd [#allocation3], %s19
      %s21 = sshll.u32 [#allocation2], 4
      %s22 = int_to_ptr.vmem [resolvable:$true] %s21
      %27 = dma.hbm_to_vmem [thread:$0]  %s0, 512, %s22, [#allocation3], 128, 128, 8
    $region5: #{tpu_custom_call.1} parent=1 // pred_fallthru
      _
    // Predicated region
    $region6: #{tpu_custom_call.1} parent=1 // pred_check
      _
    $region7: #{tpu_custom_call.1} parent=1 // pred_check_branch
      %29 = sbr.rel (0) target = $region9
    $region8: #{tpu_custom_call.1} parent=1 // pred_region
      %s31 = ssub.s32 512, 512
      %32 = vsyncadd [#allocation6], %s31
      %s33 = sshll.u32 [#allocation5], 4
      %s34 = int_to_ptr.vmem [resolvable:$true] %s33
      %39 = dma.hbm_to_vmem [thread:$0]  %s1, 512, %s34, [#allocation6], 128, 128, 8
    $region9: #{tpu_custom_call.1} parent=1 // pred_fallthru
      _
    // Predicated region
    $region10: #{tpu_custom_call.1} parent=1 // pred_check
      _
    $region11: #{tpu_custom_call.1} parent=1 // pred_check_branch
      %41 = sbr.rel (0) target = $region13
    $region12: #{tpu_custom_call.1} parent=1 // pred_region
      %s43 = ssub.s32 512, 512
      %44 = vsyncadd [#allocation6], %s43
      %s45 = sshll.u32 [#allocation7], 4
      %s46 = int_to_ptr.vmem [resolvable:$true] %s45
      %51 = dma.hbm_to_vmem [thread:$0]  %s2, 512, %s46, [#allocation6], 128, 128, 8
    $region13: #{tpu_custom_call.1} parent=1 // pred_fallthru
      _
    // Predicated region
    $region14: #{tpu_custom_call.1} parent=1 // pred_check
      _
    $region15: #{tpu_custom_call.1} parent=1 // pred_check_branch
      %53 = sbr.rel (0) target = $region17
    $region16: #{tpu_custom_call.1} parent=1 // pred_region
      _
    $region17: #{tpu_custom_call.1} parent=1 // pred_fallthru
      _
    // Predicated region
    $region18: #{tpu_custom_call.1} parent=1 // pred_check
      _
    $region19: #{tpu_custom_call.1} parent=1 // pred_check_branch
      %55 = sbr.rel (0) target = $region21
    $region20: #{tpu_custom_call.1} parent=1 // pred_region
      %s57 = ssub.s32 512, 512
      %58 = vsyncadd [#allocation9], %s57
      %s59 = sshll.u32 [#allocation8], 4
      %s60 = int_to_ptr.vmem [resolvable:$true] %s59
      %65 = dma.hbm_to_vmem [thread:$0]  %s4, 512, %s60, [#allocation9], 128, 128, 8
    $region21: #{tpu_custom_call.1} parent=1 // pred_fallthru
      _
    // Predicated region
    $region22: #{tpu_custom_call.1} parent=1 // pred_check
      _
    $region23: #{tpu_custom_call.1} parent=1 // pred_check_branch
      %67 = sbr.rel (0) target = $region25
    $region24: #{tpu_custom_call.1} parent=1 // pred_region
      _
    $region25: #{tpu_custom_call.1} parent=1 // pred_fallthru
      _
    // Predicated region
    $region26: #{tpu_custom_call.1} parent=1 // pred_check
      _
    $region27: #{tpu_custom_call.1} parent=1 // pred_check_branch
      %69 = sbr.rel (0) target = $region29
    $region28: #{tpu_custom_call.1} parent=1 // pred_region
      _
    $region29: #{tpu_custom_call.1} parent=1 // pred_fallthru
      _
    // Predicated region
    $region30: #{tpu_custom_call.1} parent=1 // pred_check
      _
    $region31: #{tpu_custom_call.1} parent=1 // pred_check_branch
      %71 = sbr.rel (0) target = $region33
    $region32: #{tpu_custom_call.1} parent=1 // pred_region
      %72 = dma.done [#allocation3], 512
    $region33: #{tpu_custom_call.1} parent=1 // pred_fallthru
      _
    // Predicated region
    $region34: #{tpu_custom_call.1} parent=1 // pred_check
      _
    $region35: #{tpu_custom_call.1} parent=1 // pred_check_branch
      %74 = sbr.rel (0) target = $region37
    $region36: #{tpu_custom_call.1} parent=1 // pred_region
      %75 = dma.done [#allocation6], 512
    $region37: #{tpu_custom_call.1} parent=1 // pred_fallthru
      _
    // Predicated region
    $region38: #{tpu_custom_call.1} parent=1 // pred_check
      _
    $region39: #{tpu_custom_call.1} parent=1 // pred_check_branch
      %77 = sbr.rel (0) target = $region41
    $region40: #{tpu_custom_call.1} parent=1 // pred_region
      %78 = dma.done [#allocation6], 512
    $region41: #{tpu_custom_call.1} parent=1 // pred_fallthru
      _
    // Predicated region
    $region42: #{tpu_custom_call.1} parent=1 // pred_check
      _
    $region43: #{tpu_custom_call.1} parent=1 // pred_check_branch
      %80 = sbr.rel (0) target = $region45
    $region44: #{tpu_custom_call.1} parent=1 // pred_region
      %81 = dma.done [#allocation9], 512
    $region45: #{tpu_custom_call.1} parent=1 // pred_fallthru
      _
    %v82 = vld [vmem:[#allocation2] sm:$0xff]
    %v83 = vld [vmem:[#allocation2 + $0x8] sm:$0xff]
    %v84 = vld [vmem:[#allocation2 + $0x10] sm:$0xff]
    %v85 = vld [vmem:[#allocation2 + $0x18] sm:$0xff]
    %v86 = vld [vmem:[#allocation7] sm:$0xff]
    %v87 = vld [vmem:[#allocation7 + $0x8] sm:$0xff]
    %v88 = vld [vmem:[#allocation7 + $0x10] sm:$0xff]
    %v89 = vld [vmem:[#allocation7 + $0x18] sm:$0xff]
    %v90 = vld [vmem:[%s3] sm:$0x1]
    %v92 = vlaneseq
    %v93 = vshrl.u32 %v92, 7
    %v94 = vsub.s32 0, %v93
    %v95 = vrot.slane %v90, %v94
    %vm97 = vcmask 261120
    %v99 = vsel %vm97, %v82, 0
    %v102 = vsel %vm97, %v83, 0
    %v105 = vsel %vm97, %v84, 0
    %v108 = vsel %vm97, %v85, 0
    %110 = vmatprep.subr.mxu0 0.0
    %111 = vmatpush1.msra.mxu0 %v86
    %112 = vmatprep.subr.mxu0 0.0
    %113 = vmatpush1.msra.mxu0 %v87
    %114 = vmatprep.subr.mxu0 0.0
    %115 = vmatpush1.msra.mxu0 %v88
    %116 = vmatprep.subr.mxu0 0.0
    %117 = vmatpush1.msra.mxu0 %v89
    %118 = vmatprep.subr.mxu0 0.0
    %119 = vmatpush1.msra.mxu0 0.0
    %120 = vmatprep.subr.mxu0 0.0
    %121 = vmatpush1.msra.mxu0 0.0
    %122 = vmatprep.subr.mxu0 0.0
    %123 = vmatpush1.msra.mxu0 0.0
    %124 = vmatprep.subr.mxu0 0.0
    %125 = vmatpush1.msra.mxu0 0.0
    %126 = vmatprep.subr.mxu0 0.0
    %127 = vmatpush1.msra.mxu0 0.0
    %128 = vmatprep.subr.mxu0 0.0
    %129 = vmatpush1.msra.mxu0 0.0
    %130 = vmatprep.subr.mxu0 0.0
    %131 = vmatpush1.msra.mxu0 0.0
    %132 = vmatprep.subr.mxu0 0.0
    %133 = vmatpush1.msra.mxu0 0.0
    %134 = vmatprep.subr.mxu0 0.0
    %135 = vmatpush1.msra.mxu0 0.0
    %136 = vmatprep.subr.mxu0 0.0
    %137 = vmatpush1.msra.mxu0 0.0
    %138 = vmatprep.subr.mxu0 0.0
    %139 = vmatpush1.msra.mxu0 0.0
    %140 = vmatprep.subr.mxu0 0.0
    %141 = vmatpush1.msra.mxu0 0.0
    %142 = vmatprep.subr.mxu0 0.0
    %143 = vmatpush1.msra.mxu0 0.0
    %144 = vmatprep.subr.mxu0 0.0
    %145 = vmatpush1.msra.mxu0 0.0
    %146 = vmatprep.subr.mxu0 0.0
    %147 = vmatpush1.msra.mxu0 0.0
    %148 = vmatprep.subr.mxu0 0.0
    %149 = vmatpush1.msra.mxu0 0.0
    %150 = vmatprep.subr.mxu0 0.0
    %151 = vmatpush1.msra.mxu0 0.0
    %152 = vmatprep.subr.mxu0 0.0
    %153 = vmatpush1.msra.mxu0 0.0
    %154 = vmatprep.subr.mxu0 0.0
    %155 = vmatpush1.msra.mxu0 0.0
    %156 = vmatprep.subr.mxu0 0.0
    %157 = vmatpush1.msra.mxu0 0.0
    %158 = vmatprep.subr.mxu0 0.0
    %159 = vmatpush1.msra.mxu0 0.0
    %160 = vmatprep.subr.mxu0 0.0
    %161 = vmatpush1.msra.mxu0 0.0
    %162 = vmatprep.subr.mxu0 0.0
    %163 = vmatpush1.msra.mxu0 0.0
    %164 = vmatprep.subr.mxu0 0.0
    %165 = vmatpush1.msra.mxu0 0.0
    %166 = vmatprep.subr.mxu0 0.0
    %167 = vmatpush1.msra.mxu0 0.0
    %168 = vmatprep.subr.mxu0 0.0
    %169 = vmatpush1.msra.mxu0 0.0
    %170 = vmatprep.subr.mxu0 0.0
    %171 = vmatpush1.msra.mxu0 0.0
    %172 = vmatprep.subr.mxu0 0.0
    %173 = vmatpush1.msra.mxu0 0.0
    %174 = vmatprep.mubr.f32.mxu0 0.0
    %175 = vmatmul.mubr.f32.gmra.mrb[0].mxu0 %v99
    %v176 = vpop.f32.mrb[0].mxu0
    %v177 = vadd.f32 %v95, %v176
    %v178 = vpop.f32.mrb[0].mxu0
    %179 = vmatprep.mubr.f32.mxu0 0.0
    %180 = vmatmul.mubr.f32.gmra.mrb[0].mxu0 %v102
    %v181 = vpop.f32.mrb[0].mxu0
    %v182 = vadd.f32 %v95, %v181
    %v183 = vpop.f32.mrb[0].mxu0
    %184 = vmatprep.mubr.f32.mxu0 0.0
    %185 = vmatmul.mubr.f32.gmra.mrb[0].mxu0 %v105
    %v186 = vpop.f32.mrb[0].mxu0
    %v187 = vadd.f32 %v95, %v186
    %v188 = vpop.f32.mrb[0].mxu0
    %189 = vmatprep.mubr.f32.mxu0 0.0
    %190 = vmatmul.mubr.f32.gmra.mrb[0].mxu0 %v108
    %v191 = vpop.f32.mrb[0].mxu0
    %v192 = vadd.f32 %v95, %v191
    %v193 = vpop.f32.mrb[0].mxu0
    %194 = vdwg.mxu0
    %v195 = vmul.f32 %v177, 0.35355338
    %v196 = vmul.f32 %v182, 0.35355338
    %v197 = vmul.f32 %v187, 0.35355338
    %v198 = vmul.f32 %v192, 0.35355338
    %v199 = vld [vmem:[#allocation5] sm:$0xff]
    %v200 = vld [vmem:[#allocation5 + $0x8] sm:$0xff]
    %v201 = vld [vmem:[#allocation5 + $0x10] sm:$0xff]
    %v202 = vld [vmem:[#allocation5 + $0x18] sm:$0xff]
    %v203 = vld [vmem:[#allocation8] sm:$0xff]
    %v204 = vld [vmem:[#allocation8 + $0x8] sm:$0xff]
    %v205 = vld [vmem:[#allocation8 + $0x10] sm:$0xff]
    %v206 = vld [vmem:[#allocation8 + $0x18] sm:$0xff]
    %v207 = vld [vmem:[%s5] sm:$0x1]
    %v209 = vlaneseq
    %v210 = vshrl.u32 %v209, 7
    %v211 = vsub.s32 0, %v210
    %v212 = vrot.slane %v207, %v211
    %v215 = vsel %vm97, %v199, 0
    %v218 = vsel %vm97, %v200, 0
    %v221 = vsel %vm97, %v201, 0
    %v224 = vsel %vm97, %v202, 0
    %226 = vmatprep.subr.mxu0 0.0
    %227 = vmatpush1.msra.mxu0 %v203
    %228 = vmatprep.subr.mxu0 0.0
    %229 = vmatpush1.msra.mxu0 %v204
    %230 = vmatprep.subr.mxu0 0.0
    %231 = vmatpush1.msra.mxu0 %v205
    %232 = vmatprep.subr.mxu0 0.0
    %233 = vmatpush1.msra.mxu0 %v206
    %234 = vmatprep.subr.mxu0 0.0
    %235 = vmatpush1.msra.mxu0 0.0
    %236 = vmatprep.subr.mxu0 0.0
    %237 = vmatpush1.msra.mxu0 0.0
    %238 = vmatprep.subr.mxu0 0.0
    %239 = vmatpush1.msra.mxu0 0.0
    %240 = vmatprep.subr.mxu0 0.0
    %241 = vmatpush1.msra.mxu0 0.0
    %242 = vmatprep.subr.mxu0 0.0
    %243 = vmatpush1.msra.mxu0 0.0
    %244 = vmatprep.subr.mxu0 0.0
    %245 = vmatpush1.msra.mxu0 0.0
    %246 = vmatprep.subr.mxu0 0.0
    %247 = vmatpush1.msra.mxu0 0.0
    %248 = vmatprep.subr.mxu0 0.0
    %249 = vmatpush1.msra.mxu0 0.0
    %250 = vmatprep.subr.mxu0 0.0
    %251 = vmatpush1.msra.mxu0 0.0
    %252 = vmatprep.subr.mxu0 0.0
    %253 = vmatpush1.msra.mxu0 0.0
    %254 = vmatprep.subr.mxu0 0.0
    %255 = vmatpush1.msra.mxu0 0.0
    %256 = vmatprep.subr.mxu0 0.0
    %257 = vmatpush1.msra.mxu0 0.0
    %258 = vmatprep.subr.mxu0 0.0
    %259 = vmatpush1.msra.mxu0 0.0
    %260 = vmatprep.subr.mxu0 0.0
    %261 = vmatpush1.msra.mxu0 0.0
    %262 = vmatprep.subr.mxu0 0.0
    %263 = vmatpush1.msra.mxu0 0.0
    %264 = vmatprep.subr.mxu0 0.0
    %265 = vmatpush1.msra.mxu0 0.0
    %266 = vmatprep.subr.mxu0 0.0
    %267 = vmatpush1.msra.mxu0 0.0
    %268 = vmatprep.subr.mxu0 0.0
    %269 = vmatpush1.msra.mxu0 0.0
    %270 = vmatprep.subr.mxu0 0.0
    %271 = vmatpush1.msra.mxu0 0.0
    %272 = vmatprep.subr.mxu0 0.0
    %273 = vmatpush1.msra.mxu0 0.0
    %274 = vmatprep.subr.mxu0 0.0
    %275 = vmatpush1.msra.mxu0 0.0
    %276 = vmatprep.subr.mxu0 0.0
    %277 = vmatpush1.msra.mxu0 0.0
    %278 = vmatprep.subr.mxu0 0.0
    %279 = vmatpush1.msra.mxu0 0.0
    %280 = vmatprep.subr.mxu0 0.0
    %281 = vmatpush1.msra.mxu0 0.0
    %282 = vmatprep.subr.mxu0 0.0
    %283 = vmatpush1.msra.mxu0 0.0
    %284 = vmatprep.subr.mxu0 0.0
    %285 = vmatpush1.msra.mxu0 0.0
    %286 = vmatprep.subr.mxu0 0.0
    %287 = vmatpush1.msra.mxu0 0.0
    %288 = vmatprep.subr.mxu0 0.0
    %289 = vmatpush1.msra.mxu0 0.0
    %290 = vmatprep.mubr.f32.mxu0 0.0
    %291 = vmatmul.mubr.f32.gmra.mrb[0].mxu0 %v215
    %v292 = vpop.f32.mrb[0].mxu0
    %v293 = vadd.f32 %v212, %v292
    %v294 = vpop.f32.mrb[0].mxu0
    %295 = vmatprep.mubr.f32.mxu0 0.0
    %296 = vmatmul.mubr.f32.gmra.mrb[0].mxu0 %v218
    %v297 = vpop.f32.mrb[0].mxu0
    %v298 = vadd.f32 %v212, %v297
    %v299 = vpop.f32.mrb[0].mxu0
    %300 = vmatprep.mubr.f32.mxu0 0.0
    %301 = vmatmul.mubr.f32.gmra.mrb[0].mxu0 %v221
    %v302 = vpop.f32.mrb[0].mxu0
    %v303 = vadd.f32 %v212, %v302
    %v304 = vpop.f32.mrb[0].mxu0
    %305 = vmatprep.mubr.f32.mxu0 0.0
    %306 = vmatmul.mubr.f32.gmra.mrb[0].mxu0 %v224
    %v307 = vpop.f32.mrb[0].mxu0
    %v308 = vadd.f32 %v212, %v307
    %v309 = vpop.f32.mrb[0].mxu0
    %310 = vdwg.mxu0
    %v311 = vld [vmem:[%s6] sm:$0x1]
    %v312 = vld [vmem:[%s6 + $0x1] sm:$0x1]
    %vm313 = vcmp.gt.f32.partialorder %v311, 0.5
    %vm314 = vcmask 64512
    %v316 = vsel %vm314, %v195, 0
    %v319 = vsel %vm314, %v196, 0
    %v322 = vsel %vm314, %v293, 0
    %v325 = vsel %vm314, %v298, 0
    %327 = vmatprep.subr.mxu0 0.0
    %328 = vmatpush1.xpose.msra.mxu0 %v322
    %329 = vmatprep.subr.mxu0 0.0
    %330 = vmatpush1.xpose.msra.mxu0 %v325
    %331 = vmatprep.subr.mxu0 0.0
    %332 = vmatpush1.xpose.msra.mxu0 0.0
    %333 = vmatprep.subr.mxu0 0.0
    %334 = vmatpush1.xpose.msra.mxu0 0.0
    %335 = vmatprep.subr.mxu0 0.0
    %336 = vmatpush1.xpose.msra.mxu0 0.0
    %337 = vmatprep.subr.mxu0 0.0
    %338 = vmatpush1.xpose.msra.mxu0 0.0
    %339 = vmatprep.subr.mxu0 0.0
    %340 = vmatpush1.xpose.msra.mxu0 0.0
    %341 = vmatprep.subr.mxu0 0.0
    %342 = vmatpush1.xpose.msra.mxu0 0.0
    %343 = vmatprep.subr.mxu0 0.0
    %344 = vmatpush1.xpose.msra.mxu0 0.0
    %345 = vmatprep.subr.mxu0 0.0
    %346 = vmatpush1.xpose.msra.mxu0 0.0
    %347 = vmatprep.subr.mxu0 0.0
    %348 = vmatpush1.xpose.msra.mxu0 0.0
    %349 = vmatprep.subr.mxu0 0.0
    %350 = vmatpush1.xpose.msra.mxu0 0.0
    %351 = vmatprep.subr.mxu0 0.0
    %352 = vmatpush1.xpose.msra.mxu0 0.0
    %353 = vmatprep.subr.mxu0 0.0
    %354 = vmatpush1.xpose.msra.mxu0 0.0
    %355 = vmatprep.subr.mxu0 0.0
    %356 = vmatpush1.xpose.msra.mxu0 0.0
    %357 = vmatprep.subr.mxu0 0.0
    %358 = vmatpush1.xpose.msra.mxu0 0.0
    %359 = vmatprep.subr.mxu0 0.0
    %360 = vmatpush1.xpose.msra.mxu0 0.0
    %361 = vmatprep.subr.mxu0 0.0
    %362 = vmatpush1.xpose.msra.mxu0 0.0
    %363 = vmatprep.subr.mxu0 0.0
    %364 = vmatpush1.xpose.msra.mxu0 0.0
    %365 = vmatprep.subr.mxu0 0.0
    %366 = vmatpush1.xpose.msra.mxu0 0.0
    %367 = vmatprep.subr.mxu0 0.0
    %368 = vmatpush1.xpose.msra.mxu0 0.0
    %369 = vmatprep.subr.mxu0 0.0
    %370 = vmatpush1.xpose.msra.mxu0 0.0
    %371 = vmatprep.subr.mxu0 0.0
    %372 = vmatpush1.xpose.msra.mxu0 0.0
    %373 = vmatprep.subr.mxu0 0.0
    %374 = vmatpush1.xpose.msra.mxu0 0.0
    %375 = vmatprep.subr.mxu0 0.0
    %376 = vmatpush1.xpose.msra.mxu0 0.0
    %377 = vmatprep.subr.mxu0 0.0
    %378 = vmatpush1.xpose.msra.mxu0 0.0
    %379 = vmatprep.subr.mxu0 0.0
    %380 = vmatpush1.xpose.msra.mxu0 0.0
    %381 = vmatprep.subr.mxu0 0.0
    %382 = vmatpush1.xpose.msra.mxu0 0.0
    %383 = vmatprep.subr.mxu0 0.0
    %384 = vmatpush1.xpose.msra.mxu0 0.0
    %385 = vmatprep.subr.mxu0 0.0
    %386 = vmatpush1.xpose.msra.mxu0 0.0
    %387 = vmatprep.subr.mxu0 0.0
    %388 = vmatpush1.xpose.msra.mxu0 0.0
    %389 = vmatprep.subr.mxu0 0.0
    %390 = vmatpush1.xpose.msra.mxu0 0.0
    %391 = vmatprep.mubr.f32.mxu0 0.0
    %392 = vmatmul.mubr.f32.gmra.mrb[0].mxu0 %v316
    %v393 = vpop.f32.mrb[0].mxu0
    %v394 = vadd.f32 0.0, %v393
    %v395 = vpop.f32.mrb[0].mxu0
    %396 = vmatprep.mubr.f32.mxu0 0.0
    %397 = vmatmul.mubr.f32.gmra.mrb[0].mxu0 %v319
    %v398 = vpop.f32.mrb[0].mxu0
    %v399 = vadd.f32 0.0, %v398
    %v400 = vpop.f32.mrb[0].mxu0
    %401 = vdwg.mxu0
    %v402 = vsel %vm313, 1, 0
    %v403 = vlaneseq
    %v404 = vshrl.u32 %v403, 7
    %v405 = vsub.s32 0, %v404
    %v406 = vrot.slane %v402, %v405
    %vm407 = vcmp.eq.s32.totalorder %v406, 1
    %v408 = vsel %vm407, -10000.0, %v394
    %v409 = vsel %vm407, -10000.0, %v399
    %vm410 = vcmask 130048
    %v411 = vsel %vm410, %v408, -inf
    %412 = vmax.xlane.f32.xlu0 %v411
    %v413 = vpop.xlane.xlu0 %412
    %v414 = vsel %vm410, %v409, -inf
    %415 = vmax.xlane.f32.xlu0 %v414
    %v416 = vpop.xlane.xlu0 %415
    %v417 = vsub.f32 %v408, %v413
    %v418 = vsub.f32 %v409, %v416
    %v419 = vmul.f32 %v417, 1.442695
    %v420 = vpow.pop %v419
    %v421 = vmul.f32 %v418, 1.442695
    %v422 = vpow.pop %v421
    %v423 = vsel %vm410, %v420, 0.0
    %424 = vadd.xlane.f32.xlu0 %v423
    %v425 = vpop.xlane.xlu0 %424
    %v426 = vsel %vm410, %v422, 0.0
    %427 = vadd.xlane.f32.xlu0 %v426
    %v428 = vpop.xlane.xlu0 %427
    %v429 = vrcp.pop %v425
    %v430 = vrcp.pop %v428
    %v431 = vmul.f32 %v420, %v429
    %v432 = vmul.f32 %v422, %v430
    %433 = vst.msk [vmem:[#allocation10] sm:$0xff] %vm410, %v431
    %434 = vst.msk [vmem:[#allocation10 + $0x8] sm:$0xff] %vm410, %v432
    %435 = vrot.lane.b32.xlu0 %v195, 120
    %v436 = vpop.permute.xlu0 %435
    %437 = vrot.lane.b32.xlu0 %v196, 120
    %v438 = vpop.permute.xlu0 %437
    %439 = vrot.lane.b32.xlu0 %v293, 120
    %v440 = vpop.permute.xlu0 %439
    %441 = vrot.lane.b32.xlu0 %v298, 120
    %v442 = vpop.permute.xlu0 %441
    %v443 = vsel %vm314, %v436, 0
    %v445 = vsel %vm314, %v438, 0
    %v447 = vsel %vm314, %v440, 0
    %v449 = vsel %vm314, %v442, 0
    %451 = vmatprep.subr.mxu0 0.0
    %452 = vmatpush1.xpose.msra.mxu0 %v447
    %453 = vmatprep.subr.mxu0 0.0
    %454 = vmatpush1.xpose.msra.mxu0 %v449
    %455 = vmatprep.subr.mxu0 0.0
    %456 = vmatpush1.xpose.msra.mxu0 0.0
    %457 = vmatprep.subr.mxu0 0.0
    %458 = vmatpush1.xpose.msra.mxu0 0.0
    %459 = vmatprep.subr.mxu0 0.0
    %460 = vmatpush1.xpose.msra.mxu0 0.0
    %461 = vmatprep.subr.mxu0 0.0
    %462 = vmatpush1.xpose.msra.mxu0 0.0
    %463 = vmatprep.subr.mxu0 0.0
    %464 = vmatpush1.xpose.msra.mxu0 0.0
    %465 = vmatprep.subr.mxu0 0.0
    %466 = vmatpush1.xpose.msra.mxu0 0.0
    %467 = vmatprep.subr.mxu0 0.0
    %468 = vmatpush1.xpose.msra.mxu0 0.0
    %469 = vmatprep.subr.mxu0 0.0
    %470 = vmatpush1.xpose.msra.mxu0 0.0
    %471 = vmatprep.subr.mxu0 0.0
    %472 = vmatpush1.xpose.msra.mxu0 0.0
    %473 = vmatprep.subr.mxu0 0.0
    %474 = vmatpush1.xpose.msra.mxu0 0.0
    %475 = vmatprep.subr.mxu0 0.0
    %476 = vmatpush1.xpose.msra.mxu0 0.0
    %477 = vmatprep.subr.mxu0 0.0
    %478 = vmatpush1.xpose.msra.mxu0 0.0
    %479 = vmatprep.subr.mxu0 0.0
    %480 = vmatpush1.xpose.msra.mxu0 0.0
    %481 = vmatprep.subr.mxu0 0.0
    %482 = vmatpush1.xpose.msra.mxu0 0.0
    %483 = vmatprep.subr.mxu0 0.0
    %484 = vmatpush1.xpose.msra.mxu0 0.0
    %485 = vmatprep.subr.mxu0 0.0
    %486 = vmatpush1.xpose.msra.mxu0 0.0
    %487 = vmatprep.subr.mxu0 0.0
    %488 = vmatpush1.xpose.msra.mxu0 0.0
    %489 = vmatprep.subr.mxu0 0.0
    %490 = vmatpush1.xpose.msra.mxu0 0.0
    %491 = vmatprep.subr.mxu0 0.0
    %492 = vmatpush1.xpose.msra.mxu0 0.0
    %493 = vmatprep.subr.mxu0 0.0
    %494 = vmatpush1.xpose.msra.mxu0 0.0
    %495 = vmatprep.subr.mxu0 0.0
    %496 = vmatpush1.xpose.msra.mxu0 0.0
    %497 = vmatprep.subr.mxu0 0.0
    %498 = vmatpush1.xpose.msra.mxu0 0.0
    %499 = vmatprep.subr.mxu0 0.0
    %500 = vmatpush1.xpose.msra.mxu0 0.0
    %501 = vmatprep.subr.mxu0 0.0
    %502 = vmatpush1.xpose.msra.mxu0 0.0
    %503 = vmatprep.subr.mxu0 0.0
    %504 = vmatpush1.xpose.msra.mxu0 0.0
    %505 = vmatprep.subr.mxu0 0.0
    %506 = vmatpush1.xpose.msra.mxu0 0.0
    %507 = vmatprep.subr.mxu0 0.0
    %508 = vmatpush1.xpose.msra.mxu0 0.0
    %509 = vmatprep.subr.mxu0 0.0
    %510 = vmatpush1.xpose.msra.mxu0 0.0
    %511 = vmatprep.subr.mxu0 0.0
    %512 = vmatpush1.xpose.msra.mxu0 0.0
    %513 = vmatprep.subr.mxu0 0.0
    %514 = vmatpush1.xpose.msra.mxu0 0.0
    %515 = vmatprep.mubr.f32.mxu0 0.0
    %516 = vmatmul.mubr.f32.gmra.mrb[0].mxu0 %v443
    %v517 = vpop.f32.mrb[0].mxu0
    %v518 = vadd.f32 0.0, %v517
    %v519 = vpop.f32.mrb[0].mxu0
    %520 = vmatprep.mubr.f32.mxu0 0.0
    %521 = vmatmul.mubr.f32.gmra.mrb[0].mxu0 %v445
    %v522 = vpop.f32.mrb[0].mxu0
    %v523 = vadd.f32 0.0, %v522
    %v524 = vpop.f32.mrb[0].mxu0
    %525 = vdwg.mxu0
    %v526 = vsel %vm407, -10000.0, %v518
    %v527 = vsel %vm407, -10000.0, %v523
    %v528 = vsel %vm410, %v526, -inf
    %529 = vmax.xlane.f32.xlu0 %v528
    %v530 = vpop.xlane.xlu0 %529
    %v531 = vsel %vm410, %v527, -inf
    %532 = vmax.xlane.f32.xlu0 %v531
    %v533 = vpop.xlane.xlu0 %532
    %v534 = vsub.f32 %v526, %v530
    %v535 = vsub.f32 %v527, %v533
    %v536 = vmul.f32 %v534, 1.442695
    %v537 = vpow.pop %v536
    %v538 = vmul.f32 %v535, 1.442695
    %v539 = vpow.pop %v538
    %v540 = vsel %vm410, %v537, 0.0
    %541 = vadd.xlane.f32.xlu0 %v540
    %v542 = vpop.xlane.xlu0 %541
    %v543 = vsel %vm410, %v539, 0.0
    %544 = vadd.xlane.f32.xlu0 %v543
    %v545 = vpop.xlane.xlu0 %544
    %v546 = vrcp.pop %v542
    %v547 = vrcp.pop %v545
    %v548 = vmul.f32 %v537, %v546
    %v549 = vmul.f32 %v539, %v547
    %s550 = scalar_lea.vmem [#allocation10], 16
    %551 = vst.msk [vmem:[%s550] sm:$0xff] %vm410, %v548
    %552 = vst.msk [vmem:[%s550 + $0x8] sm:$0xff] %vm410, %v549
    %553 = vrot.lane.b32.xlu0 %v195, 112
    %v554 = vpop.permute.xlu0 %553
    %555 = vrot.lane.b32.xlu0 %v196, 112
    %v556 = vpop.permute.xlu0 %555
    %557 = vrot.lane.b32.xlu0 %v293, 112
    %v558 = vpop.permute.xlu0 %557
    %559 = vrot.lane.b32.xlu0 %v298, 112
    %v560 = vpop.permute.xlu0 %559
    %v561 = vsel %vm314, %v554, 0
    %v563 = vsel %vm314, %v556, 0
    %v565 = vsel %vm314, %v558, 0
    %v567 = vsel %vm314, %v560, 0
    %569 = vmatprep.subr.mxu0 0.0
    %570 = vmatpush1.xpose.msra.mxu0 %v565
    %571 = vmatprep.subr.mxu0 0.0
    %572 = vmatpush1.xpose.msra.mxu0 %v567
    %573 = vmatprep.subr.mxu0 0.0
    %574 = vmatpush1.xpose.msra.mxu0 0.0
    %575 = vmatprep.subr.mxu0 0.0
    %576 = vmatpush1.xpose.msra.mxu0 0.0
    %577 = vmatprep.subr.mxu0 0.0
    %578 = vmatpush1.xpose.msra.mxu0 0.0
    %579 = vmatprep.subr.mxu0 0.0
    %580 = vmatpush1.xpose.msra.mxu0 0.0
    %581 = vmatprep.subr.mxu0 0.0
    %582 = vmatpush1.xpose.msra.mxu0 0.0
    %583 = vmatprep.subr.mxu0 0.0
    %584 = vmatpush1.xpose.msra.mxu0 0.0
    %585 = vmatprep.subr.mxu0 0.0
    %586 = vmatpush1.xpose.msra.mxu0 0.0
    %587 = vmatprep.subr.mxu0 0.0
    %588 = vmatpush1.xpose.msra.mxu0 0.0
    %589 = vmatprep.subr.mxu0 0.0
    %590 = vmatpush1.xpose.msra.mxu0 0.0
    %591 = vmatprep.subr.mxu0 0.0
    %592 = vmatpush1.xpose.msra.mxu0 0.0
    %593 = vmatprep.subr.mxu0 0.0
    %594 = vmatpush1.xpose.msra.mxu0 0.0
    %595 = vmatprep.subr.mxu0 0.0
    %596 = vmatpush1.xpose.msra.mxu0 0.0
    %597 = vmatprep.subr.mxu0 0.0
    %598 = vmatpush1.xpose.msra.mxu0 0.0
    %599 = vmatprep.subr.mxu0 0.0
    %600 = vmatpush1.xpose.msra.mxu0 0.0
    %601 = vmatprep.subr.mxu0 0.0
    %602 = vmatpush1.xpose.msra.mxu0 0.0
    %603 = vmatprep.subr.mxu0 0.0
    %604 = vmatpush1.xpose.msra.mxu0 0.0
    %605 = vmatprep.subr.mxu0 0.0
    %606 = vmatpush1.xpose.msra.mxu0 0.0
    %607 = vmatprep.subr.mxu0 0.0
    %608 = vmatpush1.xpose.msra.mxu0 0.0
    %609 = vmatprep.subr.mxu0 0.0
    %610 = vmatpush1.xpose.msra.mxu0 0.0
    %611 = vmatprep.subr.mxu0 0.0
    %612 = vmatpush1.xpose.msra.mxu0 0.0
    %613 = vmatprep.subr.mxu0 0.0
    %614 = vmatpush1.xpose.msra.mxu0 0.0
    %615 = vmatprep.subr.mxu0 0.0
    %616 = vmatpush1.xpose.msra.mxu0 0.0
    %617 = vmatprep.subr.mxu0 0.0
    %618 = vmatpush1.xpose.msra.mxu0 0.0
    %619 = vmatprep.subr.mxu0 0.0
    %620 = vmatpush1.xpose.msra.mxu0 0.0
    %621 = vmatprep.subr.mxu0 0.0
    %622 = vmatpush1.xpose.msra.mxu0 0.0
    %623 = vmatprep.subr.mxu0 0.0
    %624 = vmatpush1.xpose.msra.mxu0 0.0
    %625 = vmatprep.subr.mxu0 0.0
    %626 = vmatpush1.xpose.msra.mxu0 0.0
    %627 = vmatprep.subr.mxu0 0.0
    %628 = vmatpush1.xpose.msra.mxu0 0.0
    %629 = vmatprep.subr.mxu0 0.0
    %630 = vmatpush1.xpose.msra.mxu0 0.0
    %631 = vmatprep.subr.mxu0 0.0
    %632 = vmatpush1.xpose.msra.mxu0 0.0
    %633 = vmatprep.mubr.f32.mxu0 0.0
    %634 = vmatmul.mubr.f32.gmra.mrb[0].mxu0 %v561
    %v635 = vpop.f32.mrb[0].mxu0
    %v636 = vadd.f32 0.0, %v635
    %v637 = vpop.f32.mrb[0].mxu0
    %638 = vmatprep.mubr.f32.mxu0 0.0
    %639 = vmatmul.mubr.f32.gmra.mrb[0].mxu0 %v563
    %v640 = vpop.f32.mrb[0].mxu0
    %v641 = vadd.f32 0.0, %v640
    %v642 = vpop.f32.mrb[0].mxu0
    %643 = vdwg.mxu0
    %v644 = vsel %vm407, -10000.0, %v636
    %v645 = vsel %vm407, -10000.0, %v641
    %v646 = vsel %vm410, %v644, -inf
    %647 = vmax.xlane.f32.xlu0 %v646
    %v648 = vpop.xlane.xlu0 %647
    %v649 = vsel %vm410, %v645, -inf
    %650 = vmax.xlane.f32.xlu0 %v649
    %v651 = vpop.xlane.xlu0 %650
    %v652 = vsub.f32 %v644, %v648
    %v653 = vsub.f32 %v645, %v651
    %v654 = vmul.f32 %v652, 1.442695
    %v655 = vpow.pop %v654
    %v656 = vmul.f32 %v653, 1.442695
    %v657 = vpow.pop %v656
    %v658 = vsel %vm410, %v655, 0.0
    %659 = vadd.xlane.f32.xlu0 %v658
    %v660 = vpop.xlane.xlu0 %659
    %v661 = vsel %vm410, %v657, 0.0
    %662 = vadd.xlane.f32.xlu0 %v661
    %v663 = vpop.xlane.xlu0 %662
    %v664 = vrcp.pop %v660
    %v665 = vrcp.pop %v663
    %v666 = vmul.f32 %v655, %v664
    %v667 = vmul.f32 %v657, %v665
    %s668 = scalar_lea.vmem [#allocation10], 32
    %669 = vst.msk [vmem:[%s668] sm:$0xff] %vm410, %v666
    %670 = vst.msk [vmem:[%s668 + $0x8] sm:$0xff] %vm410, %v667
    %671 = vrot.lane.b32.xlu0 %v195, 104
    %v672 = vpop.permute.xlu0 %671
    %673 = vrot.lane.b32.xlu0 %v196, 104
    %v674 = vpop.permute.xlu0 %673
    %675 = vrot.lane.b32.xlu0 %v293, 104
    %v676 = vpop.permute.xlu0 %675
    %677 = vrot.lane.b32.xlu0 %v298, 104
    %v678 = vpop.permute.xlu0 %677
    %v679 = vsel %vm314, %v672, 0
    %v681 = vsel %vm314, %v674, 0
    %v683 = vsel %vm314, %v676, 0
    %v685 = vsel %vm314, %v678, 0
    %687 = vmatprep.subr.mxu0 0.0
    %688 = vmatpush1.xpose.msra.mxu0 %v683
    %689 = vmatprep.subr.mxu0 0.0
    %690 = vmatpush1.xpose.msra.mxu0 %v685
    %691 = vmatprep.subr.mxu0 0.0
    %692 = vmatpush1.xpose.msra.mxu0 0.0
    %693 = vmatprep.subr.mxu0 0.0
    %694 = vmatpush1.xpose.msra.mxu0 0.0
    %695 = vmatprep.subr.mxu0 0.0
    %696 = vmatpush1.xpose.msra.mxu0 0.0
    %697 = vmatprep.subr.mxu0 0.0
    %698 = vmatpush1.xpose.msra.mxu0 0.0
    %699 = vmatprep.subr.mxu0 0.0
    %700 = vmatpush1.xpose.msra.mxu0 0.0
    %701 = vmatprep.subr.mxu0 0.0
    %702 = vmatpush1.xpose.msra.mxu0 0.0
    %703 = vmatprep.subr.mxu0 0.0
    %704 = vmatpush1.xpose.msra.mxu0 0.0
    %705 = vmatprep.subr.mxu0 0.0
    %706 = vmatpush1.xpose.msra.mxu0 0.0
    %707 = vmatprep.subr.mxu0 0.0
    %708 = vmatpush1.xpose.msra.mxu0 0.0
    %709 = vmatprep.subr.mxu0 0.0
    %710 = vmatpush1.xpose.msra.mxu0 0.0
    %711 = vmatprep.subr.mxu0 0.0
    %712 = vmatpush1.xpose.msra.mxu0 0.0
    %713 = vmatprep.subr.mxu0 0.0
    %714 = vmatpush1.xpose.msra.mxu0 0.0
    %715 = vmatprep.subr.mxu0 0.0
    %716 = vmatpush1.xpose.msra.mxu0 0.0
    %717 = vmatprep.subr.mxu0 0.0
    %718 = vmatpush1.xpose.msra.mxu0 0.0
    %719 = vmatprep.subr.mxu0 0.0
    %720 = vmatpush1.xpose.msra.mxu0 0.0
    %721 = vmatprep.subr.mxu0 0.0
    %722 = vmatpush1.xpose.msra.mxu0 0.0
    %723 = vmatprep.subr.mxu0 0.0
    %724 = vmatpush1.xpose.msra.mxu0 0.0
    %725 = vmatprep.subr.mxu0 0.0
    %726 = vmatpush1.xpose.msra.mxu0 0.0
    %727 = vmatprep.subr.mxu0 0.0
    %728 = vmatpush1.xpose.msra.mxu0 0.0
    %729 = vmatprep.subr.mxu0 0.0
    %730 = vmatpush1.xpose.msra.mxu0 0.0
    %731 = vmatprep.subr.mxu0 0.0
    %732 = vmatpush1.xpose.msra.mxu0 0.0
    %733 = vmatprep.subr.mxu0 0.0
    %734 = vmatpush1.xpose.msra.mxu0 0.0
    %735 = vmatprep.subr.mxu0 0.0
    %736 = vmatpush1.xpose.msra.mxu0 0.0
    %737 = vmatprep.subr.mxu0 0.0
    %738 = vmatpush1.xpose.msra.mxu0 0.0
    %739 = vmatprep.subr.mxu0 0.0
    %740 = vmatpush1.xpose.msra.mxu0 0.0
    %741 = vmatprep.subr.mxu0 0.0
    %742 = vmatpush1.xpose.msra.mxu0 0.0
    %743 = vmatprep.subr.mxu0 0.0
    %744 = vmatpush1.xpose.msra.mxu0 0.0
    %745 = vmatprep.subr.mxu0 0.0
    %746 = vmatpush1.xpose.msra.mxu0 0.0
    %747 = vmatprep.subr.mxu0 0.0
    %748 = vmatpush1.xpose.msra.mxu0 0.0
    %749 = vmatprep.subr.mxu0 0.0
    %750 = vmatpush1.xpose.msra.mxu0 0.0
    %751 = vmatprep.mubr.f32.mxu0 0.0
    %752 = vmatmul.mubr.f32.gmra.mrb[0].mxu0 %v679
    %v753 = vpop.f32.mrb[0].mxu0
    %v754 = vadd.f32 0.0, %v753
    %v755 = vpop.f32.mrb[0].mxu0
    %756 = vmatprep.mubr.f32.mxu0 0.0
    %757 = vmatmul.mubr.f32.gmra.mrb[0].mxu0 %v681
    %v758 = vpop.f32.mrb[0].mxu0
    %v759 = vadd.f32 0.0, %v758
    %v760 = vpop.f32.mrb[0].mxu0
    %761 = vdwg.mxu0
    %v762 = vsel %vm407, -10000.0, %v754
    %v763 = vsel %vm407, -10000.0, %v759
    %v764 = vsel %vm410, %v762, -inf
    %765 = vmax.xlane.f32.xlu0 %v764
    %v766 = vpop.xlane.xlu0 %765
    %v767 = vsel %vm410, %v763, -inf
    %768 = vmax.xlane.f32.xlu0 %v767
    %v769 = vpop.xlane.xlu0 %768
    %v770 = vsub.f32 %v762, %v766
    %v771 = vsub.f32 %v763, %v769
    %v772 = vmul.f32 %v770, 1.442695
    %v773 = vpow.pop %v772
    %v774 = vmul.f32 %v771, 1.442695
    %v775 = vpow.pop %v774
    %v776 = vsel %vm410, %v773, 0.0
    %777 = vadd.xlane.f32.xlu0 %v776
    %v778 = vpop.xlane.xlu0 %777
    %v779 = vsel %vm410, %v775, 0.0
    %780 = vadd.xlane.f32.xlu0 %v779
    %v781 = vpop.xlane.xlu0 %780
    %v782 = vrcp.pop %v778
    %v783 = vrcp.pop %v781
    %v784 = vmul.f32 %v773, %v782
    %v785 = vmul.f32 %v775, %v783
    %s786 = scalar_lea.vmem [#allocation10], 48
    %787 = vst.msk [vmem:[%s786] sm:$0xff] %vm410, %v784
    %788 = vst.msk [vmem:[%s786 + $0x8] sm:$0xff] %vm410, %v785
    %vm789 = vcmp.gt.f32.partialorder %v312, 0.5
    %v791 = vsel %vm314, %v197, 0
    %v794 = vsel %vm314, %v198, 0
    %v797 = vsel %vm314, %v303, 0
    %v800 = vsel %vm314, %v308, 0
    %802 = vmatprep.subr.mxu0 0.0
    %803 = vmatpush1.xpose.msra.mxu0 %v797
    %804 = vmatprep.subr.mxu0 0.0
    %805 = vmatpush1.xpose.msra.mxu0 %v800
    %806 = vmatprep.subr.mxu0 0.0
    %807 = vmatpush1.xpose.msra.mxu0 0.0
    %808 = vmatprep.subr.mxu0 0.0
    %809 = vmatpush1.xpose.msra.mxu0 0.0
    %810 = vmatprep.subr.mxu0 0.0
    %811 = vmatpush1.xpose.msra.mxu0 0.0
    %812 = vmatprep.subr.mxu0 0.0
    %813 = vmatpush1.xpose.msra.mxu0 0.0
    %814 = vmatprep.subr.mxu0 0.0
    %815 = vmatpush1.xpose.msra.mxu0 0.0
    %816 = vmatprep.subr.mxu0 0.0
    %817 = vmatpush1.xpose.msra.mxu0 0.0
    %818 = vmatprep.subr.mxu0 0.0
    %819 = vmatpush1.xpose.msra.mxu0 0.0
    %820 = vmatprep.subr.mxu0 0.0
    %821 = vmatpush1.xpose.msra.mxu0 0.0
    %822 = vmatprep.subr.mxu0 0.0
    %823 = vmatpush1.xpose.msra.mxu0 0.0
    %824 = vmatprep.subr.mxu0 0.0
    %825 = vmatpush1.xpose.msra.mxu0 0.0
    %826 = vmatprep.subr.mxu0 0.0
    %827 = vmatpush1.xpose.msra.mxu0 0.0
    %828 = vmatprep.subr.mxu0 0.0
    %829 = vmatpush1.xpose.msra.mxu0 0.0
    %830 = vmatprep.subr.mxu0 0.0
    %831 = vmatpush1.xpose.msra.mxu0 0.0
    %832 = vmatprep.subr.mxu0 0.0
    %833 = vmatpush1.xpose.msra.mxu0 0.0
    %834 = vmatprep.subr.mxu0 0.0
    %835 = vmatpush1.xpose.msra.mxu0 0.0
    %836 = vmatprep.subr.mxu0 0.0
    %837 = vmatpush1.xpose.msra.mxu0 0.0
    %838 = vmatprep.subr.mxu0 0.0
    %839 = vmatpush1.xpose.msra.mxu0 0.0
    %840 = vmatprep.subr.mxu0 0.0
    %841 = vmatpush1.xpose.msra.mxu0 0.0
    %842 = vmatprep.subr.mxu0 0.0
    %843 = vmatpush1.xpose.msra.mxu0 0.0
    %844 = vmatprep.subr.mxu0 0.0
    %845 = vmatpush1.xpose.msra.mxu0 0.0
    %846 = vmatprep.subr.mxu0 0.0
    %847 = vmatpush1.xpose.msra.mxu0 0.0
    %848 = vmatprep.subr.mxu0 0.0
    %849 = vmatpush1.xpose.msra.mxu0 0.0
    %850 = vmatprep.subr.mxu0 0.0
    %851 = vmatpush1.xpose.msra.mxu0 0.0
    %852 = vmatprep.subr.mxu0 0.0
    %853 = vmatpush1.xpose.msra.mxu0 0.0
    %854 = vmatprep.subr.mxu0 0.0
    %855 = vmatpush1.xpose.msra.mxu0 0.0
    %856 = vmatprep.subr.mxu0 0.0
    %857 = vmatpush1.xpose.msra.mxu0 0.0
    %858 = vmatprep.subr.mxu0 0.0
    %859 = vmatpush1.xpose.msra.mxu0 0.0
    %860 = vmatprep.subr.mxu0 0.0
    %861 = vmatpush1.xpose.msra.mxu0 0.0
    %862 = vmatprep.subr.mxu0 0.0
    %863 = vmatpush1.xpose.msra.mxu0 0.0
    %864 = vmatprep.subr.mxu0 0.0
    %865 = vmatpush1.xpose.msra.mxu0 0.0
    %866 = vmatprep.mubr.f32.mxu0 0.0
    %867 = vmatmul.mubr.f32.gmra.mrb[0].mxu0 %v791
    %v868 = vpop.f32.mrb[0].mxu0
    %v869 = vadd.f32 0.0, %v868
    %v870 = vpop.f32.mrb[0].mxu0
    %871 = vmatprep.mubr.f32.mxu0 0.0
    %872 = vmatmul.mubr.f32.gmra.mrb[0].mxu0 %v794
    %v873 = vpop.f32.mrb[0].mxu0
    %v874 = vadd.f32 0.0, %v873
    %v875 = vpop.f32.mrb[0].mxu0
    %876 = vdwg.mxu0
    %v877 = vsel %vm789, 1, 0
    %v878 = vlaneseq
    %v879 = vshrl.u32 %v878, 7
    %v880 = vsub.s32 0, %v879
    %v881 = vrot.slane %v877, %v880
    %vm882 = vcmp.eq.s32.totalorder %v881, 1
    %v883 = vsel %vm882, -10000.0, %v869
    %v884 = vsel %vm882, -10000.0, %v874
    %v885 = vsel %vm410, %v883, -inf
    %886 = vmax.xlane.f32.xlu0 %v885
    %v887 = vpop.xlane.xlu0 %886
    %v888 = vsel %vm410, %v884, -inf
    %889 = vmax.xlane.f32.xlu0 %v888
    %v890 = vpop.xlane.xlu0 %889
    %v891 = vsub.f32 %v883, %v887
    %v892 = vsub.f32 %v884, %v890
    %v893 = vmul.f32 %v891, 1.442695
    %v894 = vpow.pop %v893
    %v895 = vmul.f32 %v892, 1.442695
    %v896 = vpow.pop %v895
    %v897 = vsel %vm410, %v894, 0.0
    %898 = vadd.xlane.f32.xlu0 %v897
    %v899 = vpop.xlane.xlu0 %898
    %v900 = vsel %vm410, %v896, 0.0
    %901 = vadd.xlane.f32.xlu0 %v900
    %v902 = vpop.xlane.xlu0 %901
    %v903 = vrcp.pop %v899
    %v904 = vrcp.pop %v902
    %v905 = vmul.f32 %v894, %v903
    %v906 = vmul.f32 %v896, %v904
    %s907 = scalar_lea.vmem [#allocation10], 64
    %908 = vst.msk [vmem:[%s907] sm:$0xff] %vm410, %v905
    %909 = vst.msk [vmem:[%s907 + $0x8] sm:$0xff] %vm410, %v906
    %910 = vrot.lane.b32.xlu0 %v197, 120
    %v911 = vpop.permute.xlu0 %910
    %912 = vrot.lane.b32.xlu0 %v198, 120
    %v913 = vpop.permute.xlu0 %912
    %914 = vrot.lane.b32.xlu0 %v303, 120
    %v915 = vpop.permute.xlu0 %914
    %916 = vrot.lane.b32.xlu0 %v308, 120
    %v917 = vpop.permute.xlu0 %916
    %v918 = vsel %vm314, %v911, 0
    %v920 = vsel %vm314, %v913, 0
    %v922 = vsel %vm314, %v915, 0
    %v924 = vsel %vm314, %v917, 0
    %926 = vmatprep.subr.mxu0 0.0
    %927 = vmatpush1.xpose.msra.mxu0 %v922
    %928 = vmatprep.subr.mxu0 0.0
    %929 = vmatpush1.xpose.msra.mxu0 %v924
    %930 = vmatprep.subr.mxu0 0.0
    %931 = vmatpush1.xpose.msra.mxu0 0.0
    %932 = vmatprep.subr.mxu0 0.0
    %933 = vmatpush1.xpose.msra.mxu0 0.0
    %934 = vmatprep.subr.mxu0 0.0
    %935 = vmatpush1.xpose.msra.mxu0 0.0
    %936 = vmatprep.subr.mxu0 0.0
    %937 = vmatpush1.xpose.msra.mxu0 0.0
    %938 = vmatprep.subr.mxu0 0.0
    %939 = vmatpush1.xpose.msra.mxu0 0.0
    %940 = vmatprep.subr.mxu0 0.0
    %941 = vmatpush1.xpose.msra.mxu0 0.0
    %942 = vmatprep.subr.mxu0 0.0
    %943 = vmatpush1.xpose.msra.mxu0 0.0
    %944 = vmatprep.subr.mxu0 0.0
    %945 = vmatpush1.xpose.msra.mxu0 0.0
    %946 = vmatprep.subr.mxu0 0.0
    %947 = vmatpush1.xpose.msra.mxu0 0.0
    %948 = vmatprep.subr.mxu0 0.0
    %949 = vmatpush1.xpose.msra.mxu0 0.0
    %950 = vmatprep.subr.mxu0 0.0
    %951 = vmatpush1.xpose.msra.mxu0 0.0
    %952 = vmatprep.subr.mxu0 0.0
    %953 = vmatpush1.xpose.msra.mxu0 0.0
    %954 = vmatprep.subr.mxu0 0.0
    %955 = vmatpush1.xpose.msra.mxu0 0.0
    %956 = vmatprep.subr.mxu0 0.0
    %957 = vmatpush1.xpose.msra.mxu0 0.0
    %958 = vmatprep.subr.mxu0 0.0
    %959 = vmatpush1.xpose.msra.mxu0 0.0
    %960 = vmatprep.subr.mxu0 0.0
    %961 = vmatpush1.xpose.msra.mxu0 0.0
    %962 = vmatprep.subr.mxu0 0.0
    %963 = vmatpush1.xpose.msra.mxu0 0.0
    %964 = vmatprep.subr.mxu0 0.0
    %965 = vmatpush1.xpose.msra.mxu0 0.0
    %966 = vmatprep.subr.mxu0 0.0
    %967 = vmatpush1.xpose.msra.mxu0 0.0
    %968 = vmatprep.subr.mxu0 0.0
    %969 = vmatpush1.xpose.msra.mxu0 0.0
    %970 = vmatprep.subr.mxu0 0.0
    %971 = vmatpush1.xpose.msra.mxu0 0.0
    %972 = vmatprep.subr.mxu0 0.0
    %973 = vmatpush1.xpose.msra.mxu0 0.0
    %974 = vmatprep.subr.mxu0 0.0
    %975 = vmatpush1.xpose.msra.mxu0 0.0
    %976 = vmatprep.subr.mxu0 0.0
    %977 = vmatpush1.xpose.msra.mxu0 0.0
    %978 = vmatprep.subr.mxu0 0.0
    %979 = vmatpush1.xpose.msra.mxu0 0.0
    %980 = vmatprep.subr.mxu0 0.0
    %981 = vmatpush1.xpose.msra.mxu0 0.0
    %982 = vmatprep.subr.mxu0 0.0
    %983 = vmatpush1.xpose.msra.mxu0 0.0
    %984 = vmatprep.subr.mxu0 0.0
    %985 = vmatpush1.xpose.msra.mxu0 0.0
    %986 = vmatprep.subr.mxu0 0.0
    %987 = vmatpush1.xpose.msra.mxu0 0.0
    %988 = vmatprep.subr.mxu0 0.0
    %989 = vmatpush1.xpose.msra.mxu0 0.0
    %990 = vmatprep.mubr.f32.mxu0 0.0
    %991 = vmatmul.mubr.f32.gmra.mrb[0].mxu0 %v918
    %v992 = vpop.f32.mrb[0].mxu0
    %v993 = vadd.f32 0.0, %v992
    %v994 = vpop.f32.mrb[0].mxu0
    %995 = vmatprep.mubr.f32.mxu0 0.0
    %996 = vmatmul.mubr.f32.gmra.mrb[0].mxu0 %v920
    %v997 = vpop.f32.mrb[0].mxu0
    %v998 = vadd.f32 0.0, %v997
    %v999 = vpop.f32.mrb[0].mxu0
    %1000 = vdwg.mxu0
    %v1001 = vsel %vm882, -10000.0, %v993
    %v1002 = vsel %vm882, -10000.0, %v998
    %v1003 = vsel %vm410, %v1001, -inf
    %1004 = vmax.xlane.f32.xlu0 %v1003
    %v1005 = vpop.xlane.xlu0 %1004
    %v1006 = vsel %vm410, %v1002, -inf
    %1007 = vmax.xlane.f32.xlu0 %v1006
    %v1008 = vpop.xlane.xlu0 %1007
    %v1009 = vsub.f32 %v1001, %v1005
    %v1010 = vsub.f32 %v1002, %v1008
    %v1011 = vmul.f32 %v1009, 1.442695
    %v1012 = vpow.pop %v1011
    %v1013 = vmul.f32 %v1010, 1.442695
    %v1014 = vpow.pop %v1013
    %v1015 = vsel %vm410, %v1012, 0.0
    %1016 = vadd.xlane.f32.xlu0 %v1015
    %v1017 = vpop.xlane.xlu0 %1016
    %v1018 = vsel %vm410, %v1014, 0.0
    %1019 = vadd.xlane.f32.xlu0 %v1018
    %v1020 = vpop.xlane.xlu0 %1019
    %v1021 = vrcp.pop %v1017
    %v1022 = vrcp.pop %v1020
    %v1023 = vmul.f32 %v1012, %v1021
    %v1024 = vmul.f32 %v1014, %v1022
    %s1025 = scalar_lea.vmem [#allocation10], 80
    %1026 = vst.msk [vmem:[%s1025] sm:$0xff] %vm410, %v1023
    %1027 = vst.msk [vmem:[%s1025 + $0x8] sm:$0xff] %vm410, %v1024
    %1028 = vrot.lane.b32.xlu0 %v197, 112
    %v1029 = vpop.permute.xlu0 %1028
    %1030 = vrot.lane.b32.xlu0 %v198, 112
    %v1031 = vpop.permute.xlu0 %1030
    %1032 = vrot.lane.b32.xlu0 %v303, 112
    %v1033 = vpop.permute.xlu0 %1032
    %1034 = vrot.lane.b32.xlu0 %v308, 112
    %v1035 = vpop.permute.xlu0 %1034
    %v1036 = vsel %vm314, %v1029, 0
    %v1038 = vsel %vm314, %v1031, 0
    %v1040 = vsel %vm314, %v1033, 0
    %v1042 = vsel %vm314, %v1035, 0
    %1044 = vmatprep.subr.mxu0 0.0
    %1045 = vmatpush1.xpose.msra.mxu0 %v1040
    %1046 = vmatprep.subr.mxu0 0.0
    %1047 = vmatpush1.xpose.msra.mxu0 %v1042
    %1048 = vmatprep.subr.mxu0 0.0
    %1049 = vmatpush1.xpose.msra.mxu0 0.0
    %1050 = vmatprep.subr.mxu0 0.0
    %1051 = vmatpush1.xpose.msra.mxu0 0.0
    %1052 = vmatprep.subr.mxu0 0.0
    %1053 = vmatpush1.xpose.msra.mxu0 0.0
    %1054 = vmatprep.subr.mxu0 0.0
    %1055 = vmatpush1.xpose.msra.mxu0 0.0
    %1056 = vmatprep.subr.mxu0 0.0
    %1057 = vmatpush1.xpose.msra.mxu0 0.0
    %1058 = vmatprep.subr.mxu0 0.0
    %1059 = vmatpush1.xpose.msra.mxu0 0.0
    %1060 = vmatprep.subr.mxu0 0.0
    %1061 = vmatpush1.xpose.msra.mxu0 0.0
    %1062 = vmatprep.subr.mxu0 0.0
    %1063 = vmatpush1.xpose.msra.mxu0 0.0
    %1064 = vmatprep.subr.mxu0 0.0
    %1065 = vmatpush1.xpose.msra.mxu0 0.0
    %1066 = vmatprep.subr.mxu0 0.0
    %1067 = vmatpush1.xpose.msra.mxu0 0.0
    %1068 = vmatprep.subr.mxu0 0.0
    %1069 = vmatpush1.xpose.msra.mxu0 0.0
    %1070 = vmatprep.subr.mxu0 0.0
    %1071 = vmatpush1.xpose.msra.mxu0 0.0
    %1072 = vmatprep.subr.mxu0 0.0
    %1073 = vmatpush1.xpose.msra.mxu0 0.0
    %1074 = vmatprep.subr.mxu0 0.0
    %1075 = vmatpush1.xpose.msra.mxu0 0.0
    %1076 = vmatprep.subr.mxu0 0.0
    %1077 = vmatpush1.xpose.msra.mxu0 0.0
    %1078 = vmatprep.subr.mxu0 0.0
    %1079 = vmatpush1.xpose.msra.mxu0 0.0
    %1080 = vmatprep.subr.mxu0 0.0
    %1081 = vmatpush1.xpose.msra.mxu0 0.0
    %1082 = vmatprep.subr.mxu0 0.0
    %1083 = vmatpush1.xpose.msra.mxu0 0.0
    %1084 = vmatprep.subr.mxu0 0.0
    %1085 = vmatpush1.xpose.msra.mxu0 0.0
    %1086 = vmatprep.subr.mxu0 0.0
    %1087 = vmatpush1.xpose.msra.mxu0 0.0
    %1088 = vmatprep.subr.mxu0 0.0
    %1089 = vmatpush1.xpose.msra.mxu0 0.0
    %1090 = vmatprep.subr.mxu0 0.0
    %1091 = vmatpush1.xpose.msra.mxu0 0.0
    %1092 = vmatprep.subr.mxu0 0.0
    %1093 = vmatpush1.xpose.msra.mxu0 0.0
    %1094 = vmatprep.subr.mxu0 0.0
    %1095 = vmatpush1.xpose.msra.mxu0 0.0
    %1096 = vmatprep.subr.mxu0 0.0
    %1097 = vmatpush1.xpose.msra.mxu0 0.0
    %1098 = vmatprep.subr.mxu0 0.0
    %1099 = vmatpush1.xpose.msra.mxu0 0.0
    %1100 = vmatprep.subr.mxu0 0.0
    %1101 = vmatpush1.xpose.msra.mxu0 0.0
    %1102 = vmatprep.subr.mxu0 0.0
    %1103 = vmatpush1.xpose.msra.mxu0 0.0
    %1104 = vmatprep.subr.mxu0 0.0
    %1105 = vmatpush1.xpose.msra.mxu0 0.0
    %1106 = vmatprep.subr.mxu0 0.0
    %1107 = vmatpush1.xpose.msra.mxu0 0.0
    %1108 = vmatprep.mubr.f32.mxu0 0.0
    %1109 = vmatmul.mubr.f32.gmra.mrb[0].mxu0 %v1036
    %v1110 = vpop.f32.mrb[0].mxu0
    %v1111 = vadd.f32 0.0, %v1110
    %v1112 = vpop.f32.mrb[0].mxu0
    %1113 = vmatprep.mubr.f32.mxu0 0.0
    %1114 = vmatmul.mubr.f32.gmra.mrb[0].mxu0 %v1038
    %v1115 = vpop.f32.mrb[0].mxu0
    %v1116 = vadd.f32 0.0, %v1115
    %v1117 = vpop.f32.mrb[0].mxu0
    %1118 = vdwg.mxu0
    %v1119 = vsel %vm882, -10000.0, %v1111
    %v1120 = vsel %vm882, -10000.0, %v1116
    %v1121 = vsel %vm410, %v1119, -inf
    %1122 = vmax.xlane.f32.xlu0 %v1121
    %v1123 = vpop.xlane.xlu0 %1122
    %v1124 = vsel %vm410, %v1120, -inf
    %1125 = vmax.xlane.f32.xlu0 %v1124
    %v1126 = vpop.xlane.xlu0 %1125
    %v1127 = vsub.f32 %v1119, %v1123
    %v1128 = vsub.f32 %v1120, %v1126
    %v1129 = vmul.f32 %v1127, 1.442695
    %v1130 = vpow.pop %v1129
    %v1131 = vmul.f32 %v1128, 1.442695
    %v1132 = vpow.pop %v1131
    %v1133 = vsel %vm410, %v1130, 0.0
    %1134 = vadd.xlane.f32.xlu0 %v1133
    %v1135 = vpop.xlane.xlu0 %1134
    %v1136 = vsel %vm410, %v1132, 0.0
    %1137 = vadd.xlane.f32.xlu0 %v1136
    %v1138 = vpop.xlane.xlu0 %1137
    %v1139 = vrcp.pop %v1135
    %v1140 = vrcp.pop %v1138
    %v1141 = vmul.f32 %v1130, %v1139
    %v1142 = vmul.f32 %v1132, %v1140
    %s1143 = scalar_lea.vmem [#allocation10], 96
    %1144 = vst.msk [vmem:[%s1143] sm:$0xff] %vm410, %v1141
    %1145 = vst.msk [vmem:[%s1143 + $0x8] sm:$0xff] %vm410, %v1142
    %1146 = vrot.lane.b32.xlu0 %v197, 104
    %v1147 = vpop.permute.xlu0 %1146
    %1148 = vrot.lane.b32.xlu0 %v198, 104
    %v1149 = vpop.permute.xlu0 %1148
    %1150 = vrot.lane.b32.xlu0 %v303, 104
    %v1151 = vpop.permute.xlu0 %1150
    %1152 = vrot.lane.b32.xlu0 %v308, 104
    %v1153 = vpop.permute.xlu0 %1152
    %v1154 = vsel %vm314, %v1147, 0
    %v1156 = vsel %vm314, %v1149, 0
    %v1158 = vsel %vm314, %v1151, 0
    %v1160 = vsel %vm314, %v1153, 0
    %1162 = vmatprep.subr.mxu0 0.0
    %1163 = vmatpush1.xpose.msra.mxu0 %v1158
    %1164 = vmatprep.subr.mxu0 0.0
    %1165 = vmatpush1.xpose.msra.mxu0 %v1160
    %1166 = vmatprep.subr.mxu0 0.0
    %1167 = vmatpush1.xpose.msra.mxu0 0.0
    %1168 = vmatprep.subr.mxu0 0.0
    %1169 = vmatpush1.xpose.msra.mxu0 0.0
    %1170 = vmatprep.subr.mxu0 0.0
    %1171 = vmatpush1.xpose.msra.mxu0 0.0
    %1172 = vmatprep.subr.mxu0 0.0
    %1173 = vmatpush1.xpose.msra.mxu0 0.0
    %1174 = vmatprep.subr.mxu0 0.0
    %1175 = vmatpush1.xpose.msra.mxu0 0.0
    %1176 = vmatprep.subr.mxu0 0.0
    %1177 = vmatpush1.xpose.msra.mxu0 0.0
    %1178 = vmatprep.subr.mxu0 0.0
    %1179 = vmatpush1.xpose.msra.mxu0 0.0
    %1180 = vmatprep.subr.mxu0 0.0
    %1181 = vmatpush1.xpose.msra.mxu0 0.0
    %1182 = vmatprep.subr.mxu0 0.0
    %1183 = vmatpush1.xpose.msra.mxu0 0.0
    %1184 = vmatprep.subr.mxu0 0.0
    %1185 = vmatpush1.xpose.msra.mxu0 0.0
    %1186 = vmatprep.subr.mxu0 0.0
    %1187 = vmatpush1.xpose.msra.mxu0 0.0
    %1188 = vmatprep.subr.mxu0 0.0
    %1189 = vmatpush1.xpose.msra.mxu0 0.0
    %1190 = vmatprep.subr.mxu0 0.0
    %1191 = vmatpush1.xpose.msra.mxu0 0.0
    %1192 = vmatprep.subr.mxu0 0.0
    %1193 = vmatpush1.xpose.msra.mxu0 0.0
    %1194 = vmatprep.subr.mxu0 0.0
    %1195 = vmatpush1.xpose.msra.mxu0 0.0
    %1196 = vmatprep.subr.mxu0 0.0
    %1197 = vmatpush1.xpose.msra.mxu0 0.0
    %1198 = vmatprep.subr.mxu0 0.0
    %1199 = vmatpush1.xpose.msra.mxu0 0.0
    %1200 = vmatprep.subr.mxu0 0.0
    %1201 = vmatpush1.xpose.msra.mxu0 0.0
    %1202 = vmatprep.subr.mxu0 0.0
    %1203 = vmatpush1.xpose.msra.mxu0 0.0
    %1204 = vmatprep.subr.mxu0 0.0
    %1205 = vmatpush1.xpose.msra.mxu0 0.0
    %1206 = vmatprep.subr.mxu0 0.0
    %1207 = vmatpush1.xpose.msra.mxu0 0.0
    %1208 = vmatprep.subr.mxu0 0.0
    %1209 = vmatpush1.xpose.msra.mxu0 0.0
    %1210 = vmatprep.subr.mxu0 0.0
    %1211 = vmatpush1.xpose.msra.mxu0 0.0
    %1212 = vmatprep.subr.mxu0 0.0
    %1213 = vmatpush1.xpose.msra.mxu0 0.0
    %1214 = vmatprep.subr.mxu0 0.0
    %1215 = vmatpush1.xpose.msra.mxu0 0.0
    %1216 = vmatprep.subr.mxu0 0.0
    %1217 = vmatpush1.xpose.msra.mxu0 0.0
    %1218 = vmatprep.subr.mxu0 0.0
    %1219 = vmatpush1.xpose.msra.mxu0 0.0
    %1220 = vmatprep.subr.mxu0 0.0
    %1221 = vmatpush1.xpose.msra.mxu0 0.0
    %1222 = vmatprep.subr.mxu0 0.0
    %1223 = vmatpush1.xpose.msra.mxu0 0.0
    %1224 = vmatprep.subr.mxu0 0.0
    %1225 = vmatpush1.xpose.msra.mxu0 0.0
    %1226 = vmatprep.mubr.f32.mxu0 0.0
    %1227 = vmatmul.mubr.f32.gmra.mrb[0].mxu0 %v1154
    %v1228 = vpop.f32.mrb[0].mxu0
    %v1229 = vadd.f32 0.0, %v1228
    %v1230 = vpop.f32.mrb[0].mxu0
    %1231 = vmatprep.mubr.f32.mxu0 0.0
    %1232 = vmatmul.mubr.f32.gmra.mrb[0].mxu0 %v1156
    %v1233 = vpop.f32.mrb[0].mxu0
    %v1234 = vadd.f32 0.0, %v1233
    %v1235 = vpop.f32.mrb[0].mxu0
    %1236 = vdwg.mxu0
    %v1237 = vsel %vm882, -10000.0, %v1229
    %v1238 = vsel %vm882, -10000.0, %v1234
    %v1239 = vsel %vm410, %v1237, -inf
    %1240 = vmax.xlane.f32.xlu0 %v1239
    %v1241 = vpop.xlane.xlu0 %1240
    %v1242 = vsel %vm410, %v1238, -inf
    %1243 = vmax.xlane.f32.xlu0 %v1242
    %v1244 = vpop.xlane.xlu0 %1243
    %v1245 = vsub.f32 %v1237, %v1241
    %v1246 = vsub.f32 %v1238, %v1244
    %v1247 = vmul.f32 %v1245, 1.442695
    %v1248 = vpow.pop %v1247
    %v1249 = vmul.f32 %v1246, 1.442695
    %v1250 = vpow.pop %v1249
    %v1251 = vsel %vm410, %v1248, 0.0
    %1252 = vadd.xlane.f32.xlu0 %v1251
    %v1253 = vpop.xlane.xlu0 %1252
    %v1254 = vsel %vm410, %v1250, 0.0
    %1255 = vadd.xlane.f32.xlu0 %v1254
    %v1256 = vpop.xlane.xlu0 %1255
    %v1257 = vrcp.pop %v1253
    %v1258 = vrcp.pop %v1256
    %v1259 = vmul.f32 %v1248, %v1257
    %v1260 = vmul.f32 %v1250, %v1258
    %s1261 = scalar_lea.vmem [#allocation10], 112
    %1262 = vst.msk [vmem:[%s1261] sm:$0xff] %vm410, %v1259
    %1263 = vst.msk [vmem:[%s1261 + $0x8] sm:$0xff] %vm410, %v1260
    // Predicated region
    $region46: #{tpu_custom_call.1} parent=1 // pred_check
      _
    $region47: #{tpu_custom_call.1} parent=1 // pred_check_branch
      %1265 = sbr.rel (0) target = $region49
    $region48: #{tpu_custom_call.1} parent=1 // pred_region
      %s1267 = ssub.s32 2048, 2048
      %1268 = vsyncadd [#allocation4], %s1267
      %s1269 = sshll.u32 [#allocation10], 4
      %s1270 = int_to_ptr.vmem [resolvable:$true] %s1269
      %1275 = dma.vmem_to_hbm [thread:$0]  %s1270, 2048, %s7, [#allocation4], 128, 128, 8
    $region49: #{tpu_custom_call.1} parent=1 // pred_fallthru
      _
    // Predicated region
    $region50: #{tpu_custom_call.1} parent=1 // pred_check
      _
    $region51: #{tpu_custom_call.1} parent=1 // pred_check_branch
      %1277 = sbr.rel (0) target = $region53
    $region52: #{tpu_custom_call.1} parent=1 // pred_region
      %1278 = dma.done [#allocation4], 2048
    $region53: #{tpu_custom_call.1} parent=1 // pred_fallthru
      _
    %1279 = vsyncpa [#allocation3], 1
    %1280 = vsyncpa [#allocation6], 1
    %1281 = vsyncpa [#allocation9], 1
    %1282 = vsyncpa [#allocation4], 1

</llo_original>
